<compile_context>
chip_gen: v7x
topology: tpu7x:2x2x1
jax: 0.10.0
libtpu: 0.0.40
codegen_flags: <defaults>
</compile_context>

<pallas_src>
import math
import numpy as np
import jax
import jax.numpy as jnp
from jax import lax
from jax.experimental import pallas as pl
from jax.experimental.pallas import tpu as pltpu


def _round_up(a, b):
    return (a + b - 1) // b * b


# ---------------------------------------------------------------------------
# Fused MLP kernel: o = relu(x @ W1^T + b1) @ W2^T + b2
# ---------------------------------------------------------------------------
def _mlp_kernel(x_ref, w1_ref, b1_ref, w2_ref, b2_ref, o_ref):
    # x_ref: (tm, K); w1_ref: (Hp, K); b1_ref: (1, Hp)  [f32]
    # w2_ref: (Op, Hp); b2_ref: (1, Op) [f32]; o_ref: (tm, Op)
    #
    # NOTE: a ragged last row-tile reads rows beyond M from x; those rows only
    # feed output rows the caller never observes (there is no cross-row
    # reduction), so results are unaffected.  Do not add row reductions here
    # without masking.
    x = x_ref[...].astype(w1_ref.dtype)          # no-op when dtypes already match

    # fc1: contract K against the (Hp, K) weight directly (NT matmul, no
    # wrapper-side transpose).
    h = lax.dot_general(
        x, w1_ref[...],
        dimension_numbers=(((1,), (1,)), ((), ())),
        preferred_element_type=jnp.float32)
    h = jnp.maximum(h + b1_ref[...], 0.0)        # f32 bias + ReLU

    # fc2: same NT contraction on the (Op, Hp) weight.
    y = lax.dot_general(
        h.astype(w2_ref.dtype), w2_ref[...],
        dimension_numbers=(((1,), (1,)), ((), ())),
        preferred_element_type=jnp.float32)
    o_ref[...] = (y + b2_ref[...]).astype(o_ref.dtype)


def _vmem_ceiling_bytes():
    """Per-generation VMEM ceiling (physical capacity minus headroom)."""
    try:
        cap = int(pltpu.get_tpu_info().vmem_capacity_bytes)
    except Exception:
        cap = 64 << 20            # conservative: v7x per-TC physical VMEM
    return max(cap - (16 << 20), 16 << 20)


def dim_adapter_mlp(x2d, w1p, b1p, w2p, b2p, *, out_dtype):
    """x2d: (M, K); w1p: (Hp, K); b1p: (1, Hp); w2p: (Op, Hp); b2p: (1, Op).

    Returns (M, Op) in out_dtype (caller slices Op -> d_out if needed)."""
    M, K = x2d.shape
    Hp = w1p.shape[0]
    Op = w2p.shape[0]

    # Sublane multiple for row tiles: 8 for 32-bit, 16 if x or the output is
    # sub-32-bit (bf16 tiles pack 16 rows per sublane pair).
    sub = 8
    if jnp.dtype(x2d.dtype).itemsize < 4 or jnp.dtype(out_dtype).itemsize < 4:
        sub = 16

    # Large row tiles amortize per-grid-step overhead; keep >= 2 (balanced)
    # grid steps for moderate/large M so v7x's two TensorCores share the work.
    tm_cap = 1024 if w1p.dtype == jnp.bfloat16 else 512
    n_steps = max(pl.cdiv(M, tm_cap), 2 if M >= 256 else 1)
    tm = min(tm_cap,
             _round_up(max(M, 1), sub),
             _round_up(pl.cdiv(M, n_steps), sub))
    tm = max(tm, sub)
    grid = (pl.cdiv(M, tm),)

    isz = lambda d: jnp.dtype(d).itemsize
    x_b, w_b, o_b = isz(x2d.dtype), isz(w1p.dtype), isz(out_dtype)

    cost = pl.CostEstimate(
        flops=2 * M * (K * Hp + Hp * Op),
        transcendentals=0,
        bytes_accessed=int(M * K * x_b + (Hp * K + Op * Hp) * w_b
                           + (Hp + Op) * 4 + M * Op * o_b))

    # x / out tiles double-buffered; weights + biases single-buffered
    # (constant index_map); f32 hidden + cast temporaries; slack.
    vmem_need = (2 * tm * K * x_b
                 + 2 * tm * Op * o_b
                 + (Hp * K + Op * Hp) * w_b
                 + (Hp + Op) * 4
                 + 8 * tm * Hp
                 + (4 << 20))
    vmem_limit = int(min(max(vmem_need, 16 << 20), _vmem_ceiling_bytes()))

    def build(resident_kwargs):
        return pl.pallas_call(
            _mlp_kernel,
            out_shape=jax.ShapeDtypeStruct((M, Op), out_dtype),
            grid_spec=pltpu.PrefetchScalarGridSpec(
                num_scalar_prefetch=0,
                grid=grid,
                in_specs=[
                    pl.BlockSpec((tm, K), lambda i: (i, 0)),               # x row tile
                    pl.BlockSpec((Hp, K), lambda i: (0, 0), **resident_kwargs),   # W1
                    pl.BlockSpec((1, Hp), lambda i: (0, 0), **resident_kwargs),   # b1 (f32)
                    pl.BlockSpec((Op, Hp), lambda i: (0, 0), **resident_kwargs),  # W2
                    pl.BlockSpec((1, Op), lambda i: (0, 0), **resident_kwargs),   # b2 (f32)
                ],
                out_specs=pl.BlockSpec((tm, Op), lambda i: (i, 0)),
            ),
            compiler_params=pltpu.CompilerParams(
                dimension_semantics=("parallel",),
                vmem_limit_bytes=vmem_limit),
            cost_estimate=cost,
        )

    try:
        # Resident operands single-buffered: constant index_map => no re-fetch,
        # and Buffered(1) halves their VMEM footprint vs the default 2.
        return build(dict(pipeline_mode=pl.Buffered(1)))(x2d, w1p, b1p, w2p, b2p)
    except Exception:
        # Fallback for JAX versions that reject single-buffered inputs.
        return build({})(x2d, w1p, b1p, w2p, b2p)


def _default_compute_dtype():
    # bf16 weights by default on v5e (bf16 MXU rate >> its f32 path);
    # f32 elsewhere.  Accumulation stays f32 in the kernel either way.
    try:
        kind = jax.devices()[0].device_kind.lower()
    except Exception:
        return jnp.float32
    if ("v5e" in kind) or ("v5 lite" in kind) or ("v5litepod" in kind):
        return jnp.bfloat16
    return jnp.float32


# ---------------------------------------------------------------------------
# DimAdapter module (forward semantics of the PyTorch reference)
# ---------------------------------------------------------------------------
class DimAdapterPallas:
    def __init__(self, d_in, d_hidden, d_out, *, key, compute_dtype=None):
        self.d_in, self.d_hidden, self.d_out = d_in, d_hidden, d_out
        if compute_dtype is None:
            compute_dtype = _default_compute_dtype()
        self.compute_dtype = compute_dtype
        k1, k2, k3, k4 = jax.random.split(key, 4)

        # nn.Linear init: kaiming_uniform_(a=sqrt(5)) => U(-1/sqrt(fan_in), ..)
        b1_bound = 1.0 / math.sqrt(d_in)
        b2_bound = 1.0 / math.sqrt(d_hidden)
        self.w1 = jax.random.uniform(k1, (d_hidden, d_in), jnp.float32,
                                     -b1_bound, b1_bound)
        self.b1 = jax.random.uniform(k2, (d_hidden,), jnp.float32,
                                     -b1_bound, b1_bound)
        self.w2 = jax.random.uniform(k3, (d_out, d_hidden), jnp.float32,
                                     -b2_bound, b2_bound)
        self.b2 = jax.random.uniform(k4, (d_out,), jnp.float32,
                                     -b2_bound, b2_bound)

        # Lane-dense zero-padding of the parameters, done ONCE at init.
        # Zero-padded hidden units stay exactly 0 through ReLU and contribute
        # nothing to fc2, so numerics are unchanged.  K (d_in) is NOT padded.
        Hp = _round_up(d_hidden, 128)
        Op = _round_up(d_out, 128)
        self._Hp, self._Op = Hp, Op
        w1p = jnp.zeros((Hp, d_in), jnp.float32).at[:d_hidden, :].set(self.w1)
        b1p = jnp.zeros((1, Hp), jnp.float32).at[0, :d_hidden].set(self.b1)
        w2p = jnp.zeros((Op, Hp), jnp.float32).at[:d_out, :d_hidden].set(self.w2)
        b2p = jnp.zeros((1, Op), jnp.float32).at[0, :d_out].set(self.b2)
        self._w1p = w1p.astype(compute_dtype)
        self._w2p = w2p.astype(compute_dtype)
        self._b1p = b1p   # biases stay f32: added on the f32 accumulator
        self._b2p = b2p

    def __call__(self, x, *, pad_output=False):
        assert x.shape[-1] == self.d_in
        lead = x.shape[:-1]
        # bf16 activations stream through untouched (2 B/elem HBM traffic);
        # the only cast happens per-tile inside the kernel if dtypes differ.
        x2d = x.reshape(-1, self.d_in)
        y2d = dim_adapter_mlp(x2d, self._w1p, self._b1p, self._w2p, self._b2p,
                              out_dtype=x.dtype)
        if pad_output:
            # Lane-dense (multiple-of-128) output; columns >= d_out are 0.
            return y2d.reshape(*lead, self._Op)
        if self._Op == self.d_out:
            return y2d.reshape(*lead, self.d_out)
        # TODO(synk): this slice is a separate XLA op that re-reads the padded
        # output; fuse it into the consumer (or call with pad_output=True).
        return y2d[:, :self.d_out].reshape(*lead, self.d_out)


if __name__ == "__main__":
    key = jax.random.PRNGKey(0)
    k_mod, k_x1, k_x2, k_x3 = jax.random.split(key, 4)

    d_in, d_hidden, d_out = 32, 64, 48

    def ref_forward(x2d, w1, b1, w2, b2, op_dtype=jnp.float32):
        hp = lax.dot_general(x2d.astype(op_dtype), w1.astype(op_dtype),
                             (((1,), (1,)), ((), ())),
                             precision=lax.Precision.HIGHEST,
                             preferred_element_type=jnp.float32) + b1
        hp = jnp.maximum(hp, 0.0)
        return lax.dot_general(hp.astype(op_dtype), w2.astype(op_dtype),
                               (((1,), (1,)), ((), ())),
                               precision=lax.Precision.HIGHEST,
                               preferred_element_type=jnp.float32) + b2

    # --- f32 path: M = 4*83 = 332 -> 2 balanced grid steps (tm=168), ragged last tile
    adapter = DimAdapterPallas(d_in, d_hidden, d_out, key=k_mod,
                               compute_dtype=jnp.float32)
    x = jax.random.normal(k_x1, (4, 83, d_in), dtype=jnp.float32)
    y = jax.block_until_ready(adapter(x))
    assert y.shape == (4, 83, d_out)

    y_ref = ref_forward(x.reshape(-1, d_in), adapter.w1, adapter.b1,
                        adapter.w2, adapter.b2).reshape(4, 83, d_out)
    np.testing.assert_allclose(np.asarray(y), np.asarray(y_ref),
                               rtol=1e-4, atol=1e-4)

    # Padded (lane-dense, slice-free) output path matches the sliced one.
    y_pad = jax.block_until_ready(adapter(x, pad_output=True))
    assert y_pad.shape == (4, 83, adapter._Op)
    np.testing.assert_allclose(np.asarray(y_pad[..., :d_out]), np.asarray(y),
                               rtol=0, atol=0)

    # --- bf16 weights, f32 activations & accumulation (v5e/v6e/v7x MXU fast path)
    adapter_bf16 = DimAdapterPallas(d_in, d_hidden, d_out, key=k_mod,
                                    compute_dtype=jnp.bfloat16)
    x2 = jax.random.normal(k_x2, (2, 8, d_in), dtype=jnp.float32)
    y2 = jax.block_until_ready(adapter_bf16(x2))
    assert y2.shape == (2, 8, d_out)

    y2_ref = ref_forward(x2.reshape(-1, d_in), adapter_bf16.w1, adapter_bf16.b1,
                         adapter_bf16.w2, adapter_bf16.b2,
                         op_dtype=jnp.bfloat16).reshape(2, 8, d_out)
    np.testing.assert_allclose(np.asarray(y2), np.asarray(y2_ref),
                               rtol=2e-2, atol=2e-2)

    # --- bf16 activations pass-through (2 B/elem x stream, bf16 output, tm%16==0)
    x3 = jax.random.normal(k_x3, (5, 32, d_in), dtype=jnp.float32).astype(jnp.bfloat16)
    y3 = jax.block_until_ready(adapter_bf16(x3))
    assert y3.shape == (5, 32, d_out) and y3.dtype == jnp.bfloat16

    y3_ref = ref_forward(x3.reshape(-1, d_in).astype(jnp.float32),
                         adapter_bf16.w1, adapter_bf16.b1,
                         adapter_bf16.w2, adapter_bf16.b2,
                         op_dtype=jnp.bfloat16).reshape(5, 32, d_out)
    np.testing.assert_allclose(np.asarray(y3, dtype=np.float32),
                               np.asarray(y3_ref),
                               rtol=5e-2, atol=5e-2)

    print("KERNEL_OK")
</pallas_src>

<mosaic_0001>
module attributes {stable_mosaic.version = 11 : i64} {
  func.func @_mlp_kernel(%arg0: i32, %arg1: memref<168x32xf32, #tpu.memory_space<vmem>>, %arg2: memref<128x32xf32, #tpu.memory_space<vmem>>, %arg3: memref<1x128xf32, #tpu.memory_space<vmem>>, %arg4: memref<128x128xf32, #tpu.memory_space<vmem>>, %arg5: memref<1x128xf32, #tpu.memory_space<vmem>>, %arg6: memref<168x128xf32, #tpu.memory_space<vmem>>) attributes {dimension_semantics = [#tpu.dimension_semantics<parallel>], iteration_bounds = array<i64: 2>, scalar_prefetch = 0 : i64, scratch_operands = 0 : i64, tpu.core_type = #tpu.core_type<tc>, window_params = [{transform_indices = @transform_0, window_bounds = array<i64: 168, 32>}, {pipeline_mode = #tpu.pipeline_mode<synchronous>, transform_indices = @transform_1, window_bounds = array<i64: 128, 32>}, {pipeline_mode = #tpu.pipeline_mode<synchronous>, transform_indices = @transform_2, window_bounds = array<i64: 1, 128>}, {pipeline_mode = #tpu.pipeline_mode<synchronous>, transform_indices = @transform_3, window_bounds = array<i64: 128, 128>}, {pipeline_mode = #tpu.pipeline_mode<synchronous>, transform_indices = @transform_4, window_bounds = array<i64: 1, 128>}, {transform_indices = @transform_5, window_bounds = array<i64: 168, 128>}]} {
    %c0 = arith.constant 0 : index
    %c0_0 = arith.constant 0 : index
    %0 = vector.load %arg1[%c0, %c0_0] : memref<168x32xf32, #tpu.memory_space<vmem>>, vector<168x32xf32>
    %c0_1 = arith.constant 0 : index
    %c0_2 = arith.constant 0 : index
    %1 = vector.load %arg2[%c0_1, %c0_2] : memref<128x32xf32, #tpu.memory_space<vmem>>, vector<128x32xf32>
    %cst = arith.constant dense<0.000000e+00> : vector<168x128xf32>
    %2 = tpu.matmul %0, %1, %cst {dimension_numbers = #tpu.dot_dimension_numbers<[1], [1], [0], [0], [0, 0, 1, 0], [], []>} : vector<168x32xf32>, vector<128x32xf32>, vector<168x128xf32> -> vector<168x128xf32>
    %c0_3 = arith.constant 0 : index
    %c0_4 = arith.constant 0 : index
    %3 = vector.load %arg3[%c0_3, %c0_4] : memref<1x128xf32, #tpu.memory_space<vmem>>, vector<1x128xf32>
    %4 = vector.broadcast %3 : vector<1x128xf32> to vector<168x128xf32>
    %5 = arith.addf %2, %4 : vector<168x128xf32>
    %cst_5 = arith.constant 0.000000e+00 : f32
    %6 = vector.broadcast %cst_5 : f32 to vector<168x128xf32>
    %7 = arith.maximumf %5, %6 : vector<168x128xf32>
    %c0_6 = arith.constant 0 : index
    %c0_7 = arith.constant 0 : index
    %8 = vector.load %arg4[%c0_6, %c0_7] : memref<128x128xf32, #tpu.memory_space<vmem>>, vector<128x128xf32>
    %cst_8 = arith.constant dense<0.000000e+00> : vector<168x128xf32>
    %9 = tpu.matmul %7, %8, %cst_8 {dimension_numbers = #tpu.dot_dimension_numbers<[1], [1], [0], [0], [0, 0, 1, 0], [], []>} : vector<168x128xf32>, vector<128x128xf32>, vector<168x128xf32> -> vector<168x128xf32>
    %c0_9 = arith.constant 0 : index
    %c0_10 = arith.constant 0 : index
    %10 = vector.load %arg5[%c0_9, %c0_10] : memref<1x128xf32, #tpu.memory_space<vmem>>, vector<1x128xf32>
    %11 = vector.broadcast %10 : vector<1x128xf32> to vector<168x128xf32>
    %12 = arith.addf %9, %11 : vector<168x128xf32>
    %c0_11 = arith.constant 0 : index
    %c0_12 = arith.constant 0 : index
    %13 = vector.load %arg6[%c0_11, %c0_12] : memref<168x128xf32, #tpu.memory_space<vmem>>, vector<168x128xf32>
    tpu.vector_store %arg6[%c0_11, %c0_12], %12 {strides = array<i32>} : memref<168x128xf32, #tpu.memory_space<vmem>>, vector<168x128xf32>,
    return
  }
  func.func @transform_0(%arg0: i32) -> (i32, i32) {
    %c0_i32 = arith.constant 0 : i32
    %c0_i32_0 = arith.constant 0 : i32
    return %arg0, %c0_i32 : i32, i32
  }
  func.func @transform_1(%arg0: i32) -> (i32, i32) {
    %c0_i32 = arith.constant 0 : i32
    %c0_i32_0 = arith.constant 0 : i32
    %c0_i32_1 = arith.constant 0 : i32
    return %c0_i32, %c0_i32_0 : i32, i32
  }
  func.func @transform_2(%arg0: i32) -> (i32, i32) {
    %c0_i32 = arith.constant 0 : i32
    %c0_i32_0 = arith.constant 0 : i32
    %c0_i32_1 = arith.constant 0 : i32
    return %c0_i32, %c0_i32_0 : i32, i32
  }
  func.func @transform_3(%arg0: i32) -> (i32, i32) {
    %c0_i32 = arith.constant 0 : i32
    %c0_i32_0 = arith.constant 0 : i32
    %c0_i32_1 = arith.constant 0 : i32
    return %c0_i32, %c0_i32_0 : i32, i32
  }
  func.func @transform_4(%arg0: i32) -> (i32, i32) {
    %c0_i32 = arith.constant 0 : i32
    %c0_i32_0 = arith.constant 0 : i32
    %c0_i32_1 = arith.constant 0 : i32
    return %c0_i32, %c0_i32_0 : i32, i32
  }
  func.func @transform_5(%arg0: i32) -> (i32, i32) {
    %c0_i32 = arith.constant 0 : i32
    %c0_i32_0 = arith.constant 0 : i32
    return %arg0, %c0_i32 : i32, i32
  }
}

module attributes {stable_mosaic.version = 11 : i64} {
  func.func @_mlp_kernel(%arg0: i32, %arg1: memref<168x32xf32, #tpu.memory_space<vmem>>, %arg2: memref<128x32xf32, #tpu.memory_space<vmem>>, %arg3: memref<1x128xf32, #tpu.memory_space<vmem>>, %arg4: memref<128x128xf32, #tpu.memory_space<vmem>>, %arg5: memref<1x128xf32, #tpu.memory_space<vmem>>, %arg6: memref<168x128xf32, #tpu.memory_space<vmem>>) attributes {dimension_semantics = [#tpu.dimension_semantics<parallel>], iteration_bounds = array<i64: 2>, scalar_prefetch = 0 : i64, scratch_operands = 0 : i64, tpu.core_type = #tpu.core_type<tc>, window_params = [{transform_indices = @transform_0, window_bounds = array<i64: 168, 32>}, {pipeline_mode = #tpu.pipeline_mode<synchronous>, transform_indices = @transform_1, window_bounds = array<i64: 128, 32>}, {pipeline_mode = #tpu.pipeline_mode<synchronous>, transform_indices = @transform_2, window_bounds = array<i64: 1, 128>}, {pipeline_mode = #tpu.pipeline_mode<synchronous>, transform_indices = @transform_3, window_bounds = array<i64: 128, 128>}, {pipeline_mode = #tpu.pipeline_mode<synchronous>, transform_indices = @transform_4, window_bounds = array<i64: 1, 128>}, {transform_indices = @transform_5, window_bounds = array<i64: 168, 128>}]} {
    %c0 = arith.constant 0 : index
    %c0_0 = arith.constant 0 : index
    %0 = vector.load %arg1[%c0, %c0_0] : memref<168x32xf32, #tpu.memory_space<vmem>>, vector<168x32xf32>
    %c0_1 = arith.constant 0 : index
    %c0_2 = arith.constant 0 : index
    %1 = vector.load %arg2[%c0_1, %c0_2] : memref<128x32xf32, #tpu.memory_space<vmem>>, vector<128x32xf32>
    %cst = arith.constant dense<0.000000e+00> : vector<168x128xf32>
    %2 = tpu.matmul %0, %1, %cst {dimension_numbers = #tpu.dot_dimension_numbers<[1], [1], [0], [0], [0, 0, 1, 0], [], []>} : vector<168x32xf32>, vector<128x32xf32>, vector<168x128xf32> -> vector<168x128xf32>
    %c0_3 = arith.constant 0 : index
    %c0_4 = arith.constant 0 : index
    %3 = vector.load %arg3[%c0_3, %c0_4] : memref<1x128xf32, #tpu.memory_space<vmem>>, vector<1x128xf32>
    %4 = vector.broadcast %3 : vector<1x128xf32> to vector<168x128xf32>
    %5 = arith.addf %2, %4 : vector<168x128xf32>
    %cst_5 = arith.constant 0.000000e+00 : f32
    %6 = vector.broadcast %cst_5 : f32 to vector<168x128xf32>
    %7 = arith.maximumf %5, %6 : vector<168x128xf32>
    %c0_6 = arith.constant 0 : index
    %c0_7 = arith.constant 0 : index
    %8 = vector.load %arg4[%c0_6, %c0_7] : memref<128x128xf32, #tpu.memory_space<vmem>>, vector<128x128xf32>
    %cst_8 = arith.constant dense<0.000000e+00> : vector<168x128xf32>
    %9 = tpu.matmul %7, %8, %cst_8 {dimension_numbers = #tpu.dot_dimension_numbers<[1], [1], [0], [0], [0, 0, 1, 0], [], []>} : vector<168x128xf32>, vector<128x128xf32>, vector<168x128xf32> -> vector<168x128xf32>
    %c0_9 = arith.constant 0 : index
    %c0_10 = arith.constant 0 : index
    %10 = vector.load %arg5[%c0_9, %c0_10] : memref<1x128xf32, #tpu.memory_space<vmem>>, vector<1x128xf32>
    %11 = vector.broadcast %10 : vector<1x128xf32> to vector<168x128xf32>
    %12 = arith.addf %9, %11 : vector<168x128xf32>
    %c0_11 = arith.constant 0 : index
    %c0_12 = arith.constant 0 : index
    %13 = vector.load %arg6[%c0_11, %c0_12] : memref<168x128xf32, #tpu.memory_space<vmem>>, vector<168x128xf32>
    tpu.vector_store %arg6[%c0_11, %c0_12], %12 {strides = array<i32>} : memref<168x128xf32, #tpu.memory_space<vmem>>, vector<168x128xf32>,
    return
  }
  func.func @transform_0(%arg0: i32) -> (i32, i32) {
    %c0_i32 = arith.constant 0 : i32
    %c0_i32_0 = arith.constant 0 : i32
    return %arg0, %c0_i32 : i32, i32
  }
  func.func @transform_1(%arg0: i32) -> (i32, i32) {
    %c0_i32 = arith.constant 0 : i32
    %c0_i32_0 = arith.constant 0 : i32
    %c0_i32_1 = arith.constant 0 : i32
    return %c0_i32, %c0_i32_0 : i32, i32
  }
  func.func @transform_2(%arg0: i32) -> (i32, i32) {
    %c0_i32 = arith.constant 0 : i32
    %c0_i32_0 = arith.constant 0 : i32
    %c0_i32_1 = arith.constant 0 : i32
    return %c0_i32, %c0_i32_0 : i32, i32
  }
  func.func @transform_3(%arg0: i32) -> (i32, i32) {
    %c0_i32 = arith.constant 0 : i32
    %c0_i32_0 = arith.constant 0 : i32
    %c0_i32_1 = arith.constant 0 : i32
    return %c0_i32, %c0_i32_0 : i32, i32
  }
  func.func @transform_4(%arg0: i32) -> (i32, i32) {
    %c0_i32 = arith.constant 0 : i32
    %c0_i32_0 = arith.constant 0 : i32
    %c0_i32_1 = arith.constant 0 : i32
    return %c0_i32, %c0_i32_0 : i32, i32
  }
  func.func @transform_5(%arg0: i32) -> (i32, i32) {
    %c0_i32 = arith.constant 0 : i32
    %c0_i32_0 = arith.constant 0 : i32
    return %arg0, %c0_i32 : i32, i32
  }
}

</mosaic_0001>

<llo_original>
// kernel: tpu_custom_call.1
$region0: #{tpu_custom_call.1}
  #allocation0 [shape = 'u32[]', space=smem, size = 0x4, offset = 0x4, fixed_abs, tag = 'smem constant byte address 0x4 - core index']
  #allocation1 [shape = 'u32[144,128]{1,0:T(1,128)}', space=vmem, size = 0x12000, scoped, tag = 'internal scratch']
  %s0 = inlined_call_operand.vmem [shape: f32[332,32], index: 0, kind: input, shape index: {}]
  %s1 = inlined_call_operand.vmem [shape: f32[128,32], index: 1, kind: input, shape index: {}]
  %s2 = inlined_call_operand.vmem [shape: f32[1,128], index: 2, kind: input, shape index: {}]
  %s3 = inlined_call_operand.vmem [shape: f32[128,128], index: 3, kind: input, shape index: {}]
  %s4 = inlined_call_operand.vmem [shape: f32[1,128], index: 4, kind: input, shape index: {}]
  %s5 = inlined_call_operand.hbm [shape: f32[332,128], index: 5, kind: output, shape index: {}]
  %s6 = sld [smem:[#allocation0]]
  $region53: #{tpu_custom_call.1} parent=0
    _
  %s8 = ssub.s32 1, %s6
  %s9 = scalar_select 0, %s8, %s6
  $region1: #{tpu_custom_call.1} parent=0
    #allocation2 [shape = 'u8[172032]{0}', space=vmem, size = 0x2a000, scoped, tag = 'output window, operand 0']
    #allocation3 [shape = 's32[2]{0}', space=sflag, size = 0x8, scoped, tag = 'scoped memory for tpu_custom_call.1']
    %10 = vsyncpa [#allocation3], 0
    %s11 = scalar_lea.sflag [#allocation3], 1
    %12 = vsyncpa %s11, 0
    loop: start=0, step=1, limit=4
    $region2: #{tpu_custom_call.1} parent=1 // loop_pre_header
      _
    $region3: #{tpu_custom_call.1} parent=1 // loop_header
      %s14 = sphi 0, %s18
      %p15 = scmp.ge.s32.totalorder %s14, 4
      %s24 = sphi 0, %s26
      %s27 = sphi 0, %s24
      %s28 = sphi 0, %s27
      %s44 = sphi 0, %s28
      %s48 = sphi 0, %s48
      %s50 = sphi 0, %s48
      %s51 = sphi 0, %s50
      %s65 = sphi 0, %s51
      %s69 = sphi 0, %s69
      %s71 = sphi 0, %s69
      %s72 = sphi 0, %s71
      %s86 = sphi 0, %s72
      %s90 = sphi 0, %s90
      %s92 = sphi 0, %s90
      %s93 = sphi 0, %s92
      %s107 = sphi 0, %s93
      %s111 = sphi 0, %s111
      %s113 = sphi 0, %s111
      %s114 = sphi 0, %s113
      %s128 = sphi 0, %s114
      %s134 = sphi 0, %s136
      %s137 = sphi 0, %s134
      %s138 = sphi 0, %s137
      %s154 = sphi 0, %s138
    $region4: #{tpu_custom_call.1} parent=1 // loop_header_branch
      %17 = sbr.rel (%p15) target = $region8
    $region5: #{tpu_custom_call.1} parent=1 // loop_body
      %s19 = ssub.s32 %s14, 1
      %s20 = ssub.s32 %s14, 2
      %s21 = sadd.s32 %s14, 1
      %s22 = ssub.s32 %s14, %s21
      %p23 = scmp.eq.s32.totalorder %s22, 0
      %s25 = sadd.s32 %s24, 1
      %s26 = scalar_select %p23, %s24, %s25
      %p29 = pneg %p23
      %p30 = scmp.eq.s32.totalorder %s14, 1
      %p31 = por %p29, %p30
      %p32 = scmp.ne.s32.totalorder %s24, %s27
      %p33 = scmp.eq.s32.totalorder %s14, 0
      %p34 = por %p32, %p33
      %p35 = scmp.ne.s32.totalorder %s24, %s27
      %p36 = scmp.eq.s32.totalorder %s19, 1
      %p37 = por %p35, %p36
      %p38 = scmp.ne.s32.totalorder %s27, %s28
      %p39 = scmp.eq.s32.totalorder %s19, 0
      %p40 = por %p38, %p39
      %p41 = scmp.ne.s32.totalorder %s27, %s28
      %p42 = scmp.eq.s32.totalorder %s20, 1
      %p43 = por %p41, %p42
      %p45 = scmp.ne.s32.totalorder %s28, %s44
      %p46 = scmp.eq.s32.totalorder %s20, 0
      %p47 = por %p45, %p46
      %s49 = sadd.s32 %s48, 1
      %p52 = scmp.eq.s32.totalorder %s14, 1
      %p53 = scmp.ne.s32.totalorder %s48, %s50
      %p54 = scmp.eq.s32.totalorder %s14, 0
      %p55 = por %p53, %p54
      %p56 = scmp.ne.s32.totalorder %s48, %s50
      %p57 = scmp.eq.s32.totalorder %s19, 1
      %p58 = por %p56, %p57
      %p59 = scmp.ne.s32.totalorder %s50, %s51
      %p60 = scmp.eq.s32.totalorder %s19, 0
      %p61 = por %p59, %p60
      %p62 = scmp.ne.s32.totalorder %s50, %s51
      %p63 = scmp.eq.s32.totalorder %s20, 1
      %p64 = por %p62, %p63
      %p66 = scmp.ne.s32.totalorder %s51, %s65
      %p67 = scmp.eq.s32.totalorder %s20, 0
      %p68 = por %p66, %p67
      %s70 = sadd.s32 %s69, 1
      %p73 = scmp.eq.s32.totalorder %s14, 1
      %p74 = scmp.ne.s32.totalorder %s69, %s71
      %p75 = scmp.eq.s32.totalorder %s14, 0
      %p76 = por %p74, %p75
      %p77 = scmp.ne.s32.totalorder %s69, %s71
      %p78 = scmp.eq.s32.totalorder %s19, 1
      %p79 = por %p77, %p78
      %p80 = scmp.ne.s32.totalorder %s71, %s72
      %p81 = scmp.eq.s32.totalorder %s19, 0
      %p82 = por %p80, %p81
      %p83 = scmp.ne.s32.totalorder %s71, %s72
      %p84 = scmp.eq.s32.totalorder %s20, 1
      %p85 = por %p83, %p84
      %p87 = scmp.ne.s32.totalorder %s72, %s86
      %p88 = scmp.eq.s32.totalorder %s20, 0
      %p89 = por %p87, %p88
      %s91 = sadd.s32 %s90, 1
      %p94 = scmp.eq.s32.totalorder %s14, 1
      %p95 = scmp.ne.s32.totalorder %s90, %s92
      %p96 = scmp.eq.s32.totalorder %s14, 0
      %p97 = por %p95, %p96
      %p98 = scmp.ne.s32.totalorder %s90, %s92
      %p99 = scmp.eq.s32.totalorder %s19, 1
      %p100 = por %p98, %p99
      %p101 = scmp.ne.s32.totalorder %s92, %s93
      %p102 = scmp.eq.s32.totalorder %s19, 0
      %p103 = por %p101, %p102
      %p104 = scmp.ne.s32.totalorder %s92, %s93
      %p105 = scmp.eq.s32.totalorder %s20, 1
      %p106 = por %p104, %p105
      %p108 = scmp.ne.s32.totalorder %s93, %s107
      %p109 = scmp.eq.s32.totalorder %s20, 0
      %p110 = por %p108, %p109
      %s112 = sadd.s32 %s111, 1
      %p115 = scmp.eq.s32.totalorder %s14, 1
      %p116 = scmp.ne.s32.totalorder %s111, %s113
      %p117 = scmp.eq.s32.totalorder %s14, 0
      %p118 = por %p116, %p117
      %p119 = scmp.ne.s32.totalorder %s111, %s113
      %p120 = scmp.eq.s32.totalorder %s19, 1
      %p121 = por %p119, %p120
      %p122 = scmp.ne.s32.totalorder %s113, %s114
      %p123 = scmp.eq.s32.totalorder %s19, 0
      %p124 = por %p122, %p123
      %p125 = scmp.ne.s32.totalorder %s113, %s114
      %p126 = scmp.eq.s32.totalorder %s20, 1
      %p127 = por %p125, %p126
      %p129 = scmp.ne.s32.totalorder %s114, %s128
      %p130 = scmp.eq.s32.totalorder %s20, 0
      %p131 = por %p129, %p130
      %s132 = ssub.s32 %s14, %s21
      %p133 = scmp.eq.s32.totalorder %s132, 0
      %s135 = sadd.s32 %s134, 1
      %s136 = scalar_select %p133, %s134, %s135
      %p139 = pneg %p133
      %p140 = scmp.eq.s32.totalorder %s14, 1
      %p141 = por %p139, %p140
      %p142 = scmp.ne.s32.totalorder %s134, %s137
      %p143 = scmp.eq.s32.totalorder %s14, 0
      %p144 = por %p142, %p143
      %p145 = scmp.ne.s32.totalorder %s134, %s137
      %p146 = scmp.eq.s32.totalorder %s19, 1
      %p147 = por %p145, %p146
      %p148 = scmp.ne.s32.totalorder %s137, %s138
      %p149 = scmp.eq.s32.totalorder %s19, 0
      %p150 = por %p148, %p149
      %p151 = scmp.ne.s32.totalorder %s137, %s138
      %p152 = scmp.eq.s32.totalorder %s20, 1
      %p153 = por %p151, %p152
      %p155 = scmp.ne.s32.totalorder %s138, %s154
      %p156 = scmp.eq.s32.totalorder %s20, 0
      %p157 = por %p155, %p156
      %p158 = scmp.le.s32.totalorder 1, %s14
      %p159 = scmp.lt.s32.totalorder %s14, 3
      %p160 = pnand %p158, %p159
      %p161 = pneg %p160
      // Predicated region
      $region9: #{tpu_custom_call.1} parent=5 // pred_check
        _
      $region10: #{tpu_custom_call.1} parent=5 // pred_check_branch
        %163 = sbr.rel (%p160) target = $region12
      $region11: #{tpu_custom_call.1} parent=5 // pred_region
        %s164 = ssub.s32 %s14, 1
        // Predicated region
        $region13: #{tpu_custom_call.1} parent=11 // pred_check
          %p165 = pneg %p61
        $region14: #{tpu_custom_call.1} parent=11 // pred_check_branch
          %167 = sbr.rel (%p165) target = $region16
        $region15: #{tpu_custom_call.1} parent=11 // pred_region
          _
        $region16: #{tpu_custom_call.1} parent=11 // pred_fallthru
          _
        // Predicated region
        $region17: #{tpu_custom_call.1} parent=11 // pred_check
          %p168 = pneg %p82
        $region18: #{tpu_custom_call.1} parent=11 // pred_check_branch
          %170 = sbr.rel (%p168) target = $region20
        $region19: #{tpu_custom_call.1} parent=11 // pred_region
          _
        $region20: #{tpu_custom_call.1} parent=11 // pred_fallthru
          _
        // Predicated region
        $region21: #{tpu_custom_call.1} parent=11 // pred_check
          %p171 = pneg %p103
        $region22: #{tpu_custom_call.1} parent=11 // pred_check_branch
          %173 = sbr.rel (%p171) target = $region24
        $region23: #{tpu_custom_call.1} parent=11 // pred_region
          _
        $region24: #{tpu_custom_call.1} parent=11 // pred_fallthru
          _
        // Predicated region
        $region25: #{tpu_custom_call.1} parent=11 // pred_check
          %p174 = pneg %p124
        $region26: #{tpu_custom_call.1} parent=11 // pred_check_branch
          %176 = sbr.rel (%p174) target = $region28
        $region27: #{tpu_custom_call.1} parent=11 // pred_region
          _
        $region28: #{tpu_custom_call.1} parent=11 // pred_fallthru
          _
      $region12: #{tpu_custom_call.1} parent=5 // pred_fallthru
        _
      %p177 = scmp.lt.s32.totalorder %s14, 2
      // Predicated region
      $region29: #{tpu_custom_call.1} parent=5 // pred_check
        %p178 = pneg %p177
      $region30: #{tpu_custom_call.1} parent=5 // pred_check_branch
        %180 = sbr.rel (%p178) target = $region32
      $region31: #{tpu_custom_call.1} parent=5 // pred_region
        // Predicated region
        $region33: #{tpu_custom_call.1} parent=31 // pred_check
          %p181 = pneg %p34
        $region34: #{tpu_custom_call.1} parent=31 // pred_check_branch
          %183 = sbr.rel (%p181) target = $region36
        $region35: #{tpu_custom_call.1} parent=31 // pred_region
          %s184 = smul.u32 21, %s14
          %p185 = scmp.lt.s32.totalorder %s184, 41
          %s186 = scalar_select %p185, %s184, 41
          %s187 = smul.addr %s186, 8
          %s188 = scalar_lea.vmem %s0, %s187
          %s189 = smul.u32 21, %s14
        $region36: #{tpu_custom_call.1} parent=31 // pred_fallthru
          _
      $region32: #{tpu_custom_call.1} parent=5 // pred_fallthru
        _
      %p190 = scmp.le.s32.totalorder 1, %s14
      %p191 = scmp.lt.s32.totalorder %s14, 3
      %p192 = pnand %p190, %p191
      %p193 = pneg %p192
      // Predicated region
      $region37: #{tpu_custom_call.1} parent=5 // pred_check
        _
      $region38: #{tpu_custom_call.1} parent=5 // pred_check_branch
        %195 = sbr.rel (%p192) target = $region40
      $region39: #{tpu_custom_call.1} parent=5 // pred_region
        %s196 = ssub.s32 %s14, 1
        %s197 = smul.u32 21, %s19
        %p198 = scmp.lt.s32.totalorder %s197, 41
        %s199 = scalar_select %p198, %s197, 41
        %s200 = smul.addr %s199, 8
        %s201 = scalar_lea.vmem %s0, %s200
        %p202 = pneg %p40
        %p203 = pneg %p37
        %p204 = pneg %p61
        %p205 = pneg %p58
        %p206 = pneg %p82
        %p207 = pneg %p79
        %p208 = pneg %p103
        %p209 = pneg %p100
        %p210 = pneg %p124
        %p211 = pneg %p121
        %p212 = pneg %p150
        %p213 = pneg %p147
        %s214 = sand.u32 %s137, 1
        %s215 = scalar_lea.sflag [#allocation3], %s214
        %s216 = sand.u32 %s137, 1
        %s217 = smul.addr %s216, 168
        %s218 = scalar_lea.vmem [#allocation2], %s217
        %s219 = smul.u32 21, %s19
        %p220 = scmp.lt.s32.totalorder %s219, 41
        %s221 = scalar_select %p220, %s219, 41
        %s222 = smul.addr %s221, 8
        %s223 = scalar_lea.vmem %s0, %s222
        %s224 = smul.u32 21, %s19
        %s225 = smul.u32 21, %s19
        %v226 = vld [vmem:[%s223] sm:$0xff]
        %v227 = vld [vmem:[%s223 + $0x8] sm:$0xff]
        %v228 = vld [vmem:[%s223 + $0x10] sm:$0xff]
        %v229 = vld [vmem:[%s223 + $0x18] sm:$0xff]
        %v230 = vld [vmem:[%s223 + $0x20] sm:$0xff]
        %v231 = vld [vmem:[%s223 + $0x28] sm:$0xff]
        %v232 = vld [vmem:[%s223 + $0x30] sm:$0xff]
        %v233 = vld [vmem:[%s223 + $0x38] sm:$0xff]
        %v234 = vld [vmem:[%s223 + $0x40] sm:$0xff]
        %v235 = vld [vmem:[%s223 + $0x48] sm:$0xff]
        %v236 = vld [vmem:[%s223 + $0x50] sm:$0xff]
        %v237 = vld [vmem:[%s223 + $0x58] sm:$0xff]
        %v238 = vld [vmem:[%s223 + $0x60] sm:$0xff]
        %v239 = vld [vmem:[%s223 + $0x68] sm:$0xff]
        %v240 = vld [vmem:[%s223 + $0x70] sm:$0xff]
        %v241 = vld [vmem:[%s223 + $0x78] sm:$0xff]
        %v242 = vld [vmem:[%s223 + $0x80] sm:$0xff]
        %v243 = vld [vmem:[%s223 + $0x88] sm:$0xff]
        %v244 = vld [vmem:[%s223 + $0x90] sm:$0xff]
        %v245 = vld [vmem:[%s223 + $0x98] sm:$0xff]
        %v246 = vld [vmem:[%s223 + $0xa0] sm:$0xff]
        %v247 = vld [vmem:[%s1] sm:$0xff]
        %v248 = vld [vmem:[%s1 + $0x8] sm:$0xff]
        %v249 = vld [vmem:[%s1 + $0x10] sm:$0xff]
        %v250 = vld [vmem:[%s1 + $0x18] sm:$0xff]
        %v251 = vld [vmem:[%s1 + $0x20] sm:$0xff]
        %v252 = vld [vmem:[%s1 + $0x28] sm:$0xff]
        %v253 = vld [vmem:[%s1 + $0x30] sm:$0xff]
        %v254 = vld [vmem:[%s1 + $0x38] sm:$0xff]
        %v255 = vld [vmem:[%s1 + $0x40] sm:$0xff]
        %v256 = vld [vmem:[%s1 + $0x48] sm:$0xff]
        %v257 = vld [vmem:[%s1 + $0x50] sm:$0xff]
        %v258 = vld [vmem:[%s1 + $0x58] sm:$0xff]
        %v259 = vld [vmem:[%s1 + $0x60] sm:$0xff]
        %v260 = vld [vmem:[%s1 + $0x68] sm:$0xff]
        %v261 = vld [vmem:[%s1 + $0x70] sm:$0xff]
        %v262 = vld [vmem:[%s1 + $0x78] sm:$0xff]
        %v263 = vld [vmem:[%s2] sm:$0x1]
        %v265 = vlaneseq
        %v266 = vshrl.u32 %v265, 7
        %v267 = vsub.s32 0, %v266
        %v268 = vrot.slane %v263, %v267
        %vm270 = vcmask 261120
        %v272 = vsel %vm270, %v226, 0
        %v275 = vsel %vm270, %v227, 0
        %v278 = vsel %vm270, %v228, 0
        %v281 = vsel %vm270, %v229, 0
        %v284 = vsel %vm270, %v230, 0
        %v287 = vsel %vm270, %v231, 0
        %v290 = vsel %vm270, %v232, 0
        %v293 = vsel %vm270, %v233, 0
        %v296 = vsel %vm270, %v234, 0
        %v299 = vsel %vm270, %v235, 0
        %v302 = vsel %vm270, %v236, 0
        %v305 = vsel %vm270, %v237, 0
        %v308 = vsel %vm270, %v238, 0
        %v311 = vsel %vm270, %v239, 0
        %v314 = vsel %vm270, %v240, 0
        %v317 = vsel %vm270, %v241, 0
        %v320 = vsel %vm270, %v242, 0
        %v323 = vsel %vm270, %v243, 0
        %v326 = vsel %vm270, %v244, 0
        %v329 = vsel %vm270, %v245, 0
        %v332 = vsel %vm270, %v246, 0
        %v335 = vsel %vm270, %v247, 0
        %v338 = vsel %vm270, %v248, 0
        %v341 = vsel %vm270, %v249, 0
        %v344 = vsel %vm270, %v250, 0
        %v347 = vsel %vm270, %v251, 0
        %v350 = vsel %vm270, %v252, 0
        %v353 = vsel %vm270, %v253, 0
        %v356 = vsel %vm270, %v254, 0
        %v359 = vsel %vm270, %v255, 0
        %v362 = vsel %vm270, %v256, 0
        %v365 = vsel %vm270, %v257, 0
        %v368 = vsel %vm270, %v258, 0
        %v371 = vsel %vm270, %v259, 0
        %v374 = vsel %vm270, %v260, 0
        %v377 = vsel %vm270, %v261, 0
        %v380 = vsel %vm270, %v262, 0
        %382 = vmatprep.subr.mxu0 0.0
        %383 = vmatpush1.xpose.msra.mxu0 %v335
        %384 = vmatprep.subr.mxu0 0.0
        %385 = vmatpush1.xpose.msra.mxu0 %v338
        %386 = vmatprep.subr.mxu0 0.0
        %387 = vmatpush1.xpose.msra.mxu0 %v341
        %388 = vmatprep.subr.mxu0 0.0
        %389 = vmatpush1.xpose.msra.mxu0 %v344
        %390 = vmatprep.subr.mxu0 0.0
        %391 = vmatpush1.xpose.msra.mxu0 %v347
        %392 = vmatprep.subr.mxu0 0.0
        %393 = vmatpush1.xpose.msra.mxu0 %v350
        %394 = vmatprep.subr.mxu0 0.0
        %395 = vmatpush1.xpose.msra.mxu0 %v353
        %396 = vmatprep.subr.mxu0 0.0
        %397 = vmatpush1.xpose.msra.mxu0 %v356
        %398 = vmatprep.subr.mxu0 0.0
        %399 = vmatpush1.xpose.msra.mxu0 %v359
        %400 = vmatprep.subr.mxu0 0.0
        %401 = vmatpush1.xpose.msra.mxu0 %v362
        %402 = vmatprep.subr.mxu0 0.0
        %403 = vmatpush1.xpose.msra.mxu0 %v365
        %404 = vmatprep.subr.mxu0 0.0
        %405 = vmatpush1.xpose.msra.mxu0 %v368
        %406 = vmatprep.subr.mxu0 0.0
        %407 = vmatpush1.xpose.msra.mxu0 %v371
        %408 = vmatprep.subr.mxu0 0.0
        %409 = vmatpush1.xpose.msra.mxu0 %v374
        %410 = vmatprep.subr.mxu0 0.0
        %411 = vmatpush1.xpose.msra.mxu0 %v377
        %412 = vmatprep.subr.mxu0 0.0
        %413 = vmatpush1.xpose.msra.mxu0 %v380
        %414 = vmatprep.subr.mxu0 0.0
        %415 = vmatpush1.xpose.msra.mxu0 0.0
        %416 = vmatprep.subr.mxu0 0.0
        %417 = vmatpush1.xpose.msra.mxu0 0.0
        %418 = vmatprep.subr.mxu0 0.0
        %419 = vmatpush1.xpose.msra.mxu0 0.0
        %420 = vmatprep.subr.mxu0 0.0
        %421 = vmatpush1.xpose.msra.mxu0 0.0
        %422 = vmatprep.subr.mxu0 0.0
        %423 = vmatpush1.xpose.msra.mxu0 0.0
        %424 = vmatprep.subr.mxu0 0.0
        %425 = vmatpush1.xpose.msra.mxu0 0.0
        %426 = vmatprep.subr.mxu0 0.0
        %427 = vmatpush1.xpose.msra.mxu0 0.0
        %428 = vmatprep.subr.mxu0 0.0
        %429 = vmatpush1.xpose.msra.mxu0 0.0
        %430 = vmatprep.subr.mxu0 0.0
        %431 = vmatpush1.xpose.msra.mxu0 0.0
        %432 = vmatprep.subr.mxu0 0.0
        %433 = vmatpush1.xpose.msra.mxu0 0.0
        %434 = vmatprep.subr.mxu0 0.0
        %435 = vmatpush1.xpose.msra.mxu0 0.0
        %436 = vmatprep.subr.mxu0 0.0
        %437 = vmatpush1.xpose.msra.mxu0 0.0
        %438 = vmatprep.subr.mxu0 0.0
        %439 = vmatpush1.xpose.msra.mxu0 0.0
        %440 = vmatprep.subr.mxu0 0.0
        %441 = vmatpush1.xpose.msra.mxu0 0.0
        %442 = vmatprep.subr.mxu0 0.0
        %443 = vmatpush1.xpose.msra.mxu0 0.0
        %444 = vmatprep.subr.mxu0 0.0
        %445 = vmatpush1.xpose.msra.mxu0 0.0
        %446 = vmatprep.mubr.f32.mxu0 0.0
        %447 = vmatmul.mubr.f32.gmra.mrb[0].mxu0 %v272
        %v448 = vpop.f32.mrb[0].mxu0
        %v449 = vadd.f32 %v268, %v448
        %v450 = vpop.f32.mrb[0].mxu0
        %451 = vmatprep.mubr.f32.mxu0 0.0
        %452 = vmatmul.mubr.f32.gmra.mrb[0].mxu0 %v275
        %v453 = vpop.f32.mrb[0].mxu0
        %v454 = vadd.f32 %v268, %v453
        %v455 = vpop.f32.mrb[0].mxu0
        %456 = vmatprep.mubr.f32.mxu0 0.0
        %457 = vmatmul.mubr.f32.gmra.mrb[0].mxu0 %v278
        %v458 = vpop.f32.mrb[0].mxu0
        %v459 = vadd.f32 %v268, %v458
        %v460 = vpop.f32.mrb[0].mxu0
        %461 = vmatprep.mubr.f32.mxu0 0.0
        %462 = vmatmul.mubr.f32.gmra.mrb[0].mxu0 %v281
        %v463 = vpop.f32.mrb[0].mxu0
        %v464 = vadd.f32 %v268, %v463
        %v465 = vpop.f32.mrb[0].mxu0
        %466 = vmatprep.mubr.f32.mxu0 0.0
        %467 = vmatmul.mubr.f32.gmra.mrb[0].mxu0 %v284
        %v468 = vpop.f32.mrb[0].mxu0
        %v469 = vadd.f32 %v268, %v468
        %v470 = vpop.f32.mrb[0].mxu0
        %471 = vmatprep.mubr.f32.mxu0 0.0
        %472 = vmatmul.mubr.f32.gmra.mrb[0].mxu0 %v287
        %v473 = vpop.f32.mrb[0].mxu0
        %v474 = vadd.f32 %v268, %v473
        %v475 = vpop.f32.mrb[0].mxu0
        %476 = vmatprep.mubr.f32.mxu0 0.0
        %477 = vmatmul.mubr.f32.gmra.mrb[0].mxu0 %v290
        %v478 = vpop.f32.mrb[0].mxu0
        %v479 = vadd.f32 %v268, %v478
        %v480 = vpop.f32.mrb[0].mxu0
        %481 = vmatprep.mubr.f32.mxu0 0.0
        %482 = vmatmul.mubr.f32.gmra.mrb[0].mxu0 %v293
        %v483 = vpop.f32.mrb[0].mxu0
        %v484 = vadd.f32 %v268, %v483
        %v485 = vpop.f32.mrb[0].mxu0
        %486 = vmatprep.mubr.f32.mxu0 0.0
        %487 = vmatmul.mubr.f32.gmra.mrb[0].mxu0 %v296
        %v488 = vpop.f32.mrb[0].mxu0
        %v489 = vadd.f32 %v268, %v488
        %v490 = vpop.f32.mrb[0].mxu0
        %491 = vmatprep.mubr.f32.mxu0 0.0
        %492 = vmatmul.mubr.f32.gmra.mrb[0].mxu0 %v299
        %v493 = vpop.f32.mrb[0].mxu0
        %v494 = vadd.f32 %v268, %v493
        %v495 = vpop.f32.mrb[0].mxu0
        %496 = vmatprep.mubr.f32.mxu0 0.0
        %497 = vmatmul.mubr.f32.gmra.mrb[0].mxu0 %v302
        %v498 = vpop.f32.mrb[0].mxu0
        %v499 = vadd.f32 %v268, %v498
        %v500 = vpop.f32.mrb[0].mxu0
        %501 = vmatprep.mubr.f32.mxu0 0.0
        %502 = vmatmul.mubr.f32.gmra.mrb[0].mxu0 %v305
        %v503 = vpop.f32.mrb[0].mxu0
        %v504 = vadd.f32 %v268, %v503
        %v505 = vpop.f32.mrb[0].mxu0
        %506 = vmatprep.mubr.f32.mxu0 0.0
        %507 = vmatmul.mubr.f32.gmra.mrb[0].mxu0 %v308
        %v508 = vpop.f32.mrb[0].mxu0
        %v509 = vadd.f32 %v268, %v508
        %v510 = vpop.f32.mrb[0].mxu0
        %511 = vmatprep.mubr.f32.mxu0 0.0
        %512 = vmatmul.mubr.f32.gmra.mrb[0].mxu0 %v311
        %v513 = vpop.f32.mrb[0].mxu0
        %v514 = vadd.f32 %v268, %v513
        %v515 = vpop.f32.mrb[0].mxu0
        %516 = vmatprep.mubr.f32.mxu0 0.0
        %517 = vmatmul.mubr.f32.gmra.mrb[0].mxu0 %v314
        %v518 = vpop.f32.mrb[0].mxu0
        %v519 = vadd.f32 %v268, %v518
        %v520 = vpop.f32.mrb[0].mxu0
        %521 = vmatprep.mubr.f32.mxu0 0.0
        %522 = vmatmul.mubr.f32.gmra.mrb[0].mxu0 %v317
        %v523 = vpop.f32.mrb[0].mxu0
        %v524 = vadd.f32 %v268, %v523
        %v525 = vpop.f32.mrb[0].mxu0
        %526 = vmatprep.mubr.f32.mxu0 0.0
        %527 = vmatmul.mubr.f32.gmra.mrb[0].mxu0 %v320
        %v528 = vpop.f32.mrb[0].mxu0
        %v529 = vadd.f32 %v268, %v528
        %v530 = vpop.f32.mrb[0].mxu0
        %531 = vmatprep.mubr.f32.mxu0 0.0
        %532 = vmatmul.mubr.f32.gmra.mrb[0].mxu0 %v323
        %v533 = vpop.f32.mrb[0].mxu0
        %v534 = vadd.f32 %v268, %v533
        %v535 = vpop.f32.mrb[0].mxu0
        %536 = vmatprep.mubr.f32.mxu0 0.0
        %537 = vmatmul.mubr.f32.gmra.mrb[0].mxu0 %v326
        %v538 = vpop.f32.mrb[0].mxu0
        %v539 = vadd.f32 %v268, %v538
        %v540 = vpop.f32.mrb[0].mxu0
        %541 = vmatprep.mubr.f32.mxu0 0.0
        %542 = vmatmul.mubr.f32.gmra.mrb[0].mxu0 %v329
        %v543 = vpop.f32.mrb[0].mxu0
        %v544 = vadd.f32 %v268, %v543
        %v545 = vpop.f32.mrb[0].mxu0
        %546 = vmatprep.mubr.f32.mxu0 0.0
        %547 = vmatmul.mubr.f32.gmra.mrb[0].mxu0 %v332
        %v548 = vpop.f32.mrb[0].mxu0
        %v549 = vadd.f32 %v268, %v548
        %v550 = vpop.f32.mrb[0].mxu0
        %551 = vdwg.mxu0
        %v552 = vmax.f32 %v449, 0.0
        %v553 = vmax.f32 %v454, 0.0
        %v554 = vmax.f32 %v459, 0.0
        %v555 = vmax.f32 %v464, 0.0
        %v556 = vmax.f32 %v469, 0.0
        %v557 = vmax.f32 %v474, 0.0
        %v558 = vmax.f32 %v479, 0.0
        %v559 = vmax.f32 %v484, 0.0
        %v560 = vmax.f32 %v489, 0.0
        %v561 = vmax.f32 %v494, 0.0
        %v562 = vmax.f32 %v499, 0.0
        %v563 = vmax.f32 %v504, 0.0
        %v564 = vmax.f32 %v509, 0.0
        %v565 = vmax.f32 %v514, 0.0
        %v566 = vmax.f32 %v519, 0.0
        %v567 = vmax.f32 %v524, 0.0
        %v568 = vmax.f32 %v529, 0.0
        %v569 = vmax.f32 %v534, 0.0
        %v570 = vmax.f32 %v539, 0.0
        %v571 = vmax.f32 %v544, 0.0
        %v572 = vmax.f32 %v549, 0.0
        %v573 = vld [vmem:[%s3] sm:$0xff]
        %v574 = vld [vmem:[%s3 + $0x8] sm:$0xff]
        %v575 = vld [vmem:[%s3 + $0x10] sm:$0xff]
        %v576 = vld [vmem:[%s3 + $0x18] sm:$0xff]
        %v577 = vld [vmem:[%s3 + $0x20] sm:$0xff]
        %v578 = vld [vmem:[%s3 + $0x28] sm:$0xff]
        %v579 = vld [vmem:[%s3 + $0x30] sm:$0xff]
        %v580 = vld [vmem:[%s3 + $0x38] sm:$0xff]
        %v581 = vld [vmem:[%s3 + $0x40] sm:$0xff]
        %v582 = vld [vmem:[%s3 + $0x48] sm:$0xff]
        %v583 = vld [vmem:[%s3 + $0x50] sm:$0xff]
        %v584 = vld [vmem:[%s3 + $0x58] sm:$0xff]
        %v585 = vld [vmem:[%s3 + $0x60] sm:$0xff]
        %v586 = vld [vmem:[%s3 + $0x68] sm:$0xff]
        %v587 = vld [vmem:[%s3 + $0x70] sm:$0xff]
        %v588 = vld [vmem:[%s3 + $0x78] sm:$0xff]
        %v589 = vld [vmem:[%s4] sm:$0x1]
        %v591 = vlaneseq
        %v592 = vshrl.u32 %v591, 7
        %v593 = vsub.s32 0, %v592
        %v594 = vrot.slane %v589, %v593
        %596 = vmatprep.subr.mxu0 0.0
        %597 = vmatpush1.xpose.msra.mxu0 %v573
        %598 = vmatprep.subr.mxu0 0.0
        %599 = vmatpush1.xpose.msra.mxu0 %v574
        %600 = vmatprep.subr.mxu0 0.0
        %601 = vmatpush1.xpose.msra.mxu0 %v575
        %602 = vmatprep.subr.mxu0 0.0
        %603 = vmatpush1.xpose.msra.mxu0 %v576
        %604 = vmatprep.subr.mxu0 0.0
        %605 = vmatpush1.xpose.msra.mxu0 %v577
        %606 = vmatprep.subr.mxu0 0.0
        %607 = vmatpush1.xpose.msra.mxu0 %v578
        %608 = vmatprep.subr.mxu0 0.0
        %609 = vmatpush1.xpose.msra.mxu0 %v579
        %610 = vmatprep.subr.mxu0 0.0
        %611 = vmatpush1.xpose.msra.mxu0 %v580
        %612 = vmatprep.subr.mxu0 0.0
        %613 = vmatpush1.xpose.msra.mxu0 %v581
        %614 = vmatprep.subr.mxu0 0.0
        %615 = vmatpush1.xpose.msra.mxu0 %v582
        %616 = vmatprep.subr.mxu0 0.0
        %617 = vmatpush1.xpose.msra.mxu0 %v583
        %618 = vmatprep.subr.mxu0 0.0
        %619 = vmatpush1.xpose.msra.mxu0 %v584
        %620 = vmatprep.subr.mxu0 0.0
        %621 = vmatpush1.xpose.msra.mxu0 %v585
        %622 = vmatprep.subr.mxu0 0.0
        %623 = vmatpush1.xpose.msra.mxu0 %v586
        %624 = vmatprep.subr.mxu0 0.0
        %625 = vmatpush1.xpose.msra.mxu0 %v587
        %626 = vmatprep.subr.mxu0 0.0
        %627 = vmatpush1.xpose.msra.mxu0 %v588
        %628 = vmatprep.subr.mxu0 0.0
        %629 = vmatpush1.xpose.msra.mxu0 0.0
        %630 = vmatprep.subr.mxu0 0.0
        %631 = vmatpush1.xpose.msra.mxu0 0.0
        %632 = vmatprep.subr.mxu0 0.0
        %633 = vmatpush1.xpose.msra.mxu0 0.0
        %634 = vmatprep.subr.mxu0 0.0
        %635 = vmatpush1.xpose.msra.mxu0 0.0
        %636 = vmatprep.subr.mxu0 0.0
        %637 = vmatpush1.xpose.msra.mxu0 0.0
        %638 = vmatprep.subr.mxu0 0.0
        %639 = vmatpush1.xpose.msra.mxu0 0.0
        %640 = vmatprep.subr.mxu0 0.0
        %641 = vmatpush1.xpose.msra.mxu0 0.0
        %642 = vmatprep.subr.mxu0 0.0
        %643 = vmatpush1.xpose.msra.mxu0 0.0
        %644 = vmatprep.subr.mxu0 0.0
        %645 = vmatpush1.xpose.msra.mxu0 0.0
        %646 = vmatprep.subr.mxu0 0.0
        %647 = vmatpush1.xpose.msra.mxu0 0.0
        %648 = vmatprep.subr.mxu0 0.0
        %649 = vmatpush1.xpose.msra.mxu0 0.0
        %650 = vmatprep.subr.mxu0 0.0
        %651 = vmatpush1.xpose.msra.mxu0 0.0
        %652 = vmatprep.subr.mxu0 0.0
        %653 = vmatpush1.xpose.msra.mxu0 0.0
        %654 = vmatprep.subr.mxu0 0.0
        %655 = vmatpush1.xpose.msra.mxu0 0.0
        %656 = vmatprep.subr.mxu0 0.0
        %657 = vmatpush1.xpose.msra.mxu0 0.0
        %658 = vmatprep.subr.mxu0 0.0
        %659 = vmatpush1.xpose.msra.mxu0 0.0
        %660 = vmatprep.mubr.f32.mxu0 0.0
        %661 = vmatmul.mubr.f32.gmra.mrb[0].mxu0 %v552
        %v662 = vpop.f32.mrb[0].mxu0
        %v663 = vadd.f32 %v594, %v662
        %v664 = vpop.f32.mrb[0].mxu0
        %665 = vmatprep.mubr.f32.mxu0 0.0
        %666 = vmatmul.mubr.f32.gmra.mrb[0].mxu0 %v553
        %v667 = vpop.f32.mrb[0].mxu0
        %v668 = vadd.f32 %v594, %v667
        %v669 = vpop.f32.mrb[0].mxu0
        %670 = vmatprep.mubr.f32.mxu0 0.0
        %671 = vmatmul.mubr.f32.gmra.mrb[0].mxu0 %v554
        %v672 = vpop.f32.mrb[0].mxu0
        %v673 = vadd.f32 %v594, %v672
        %v674 = vpop.f32.mrb[0].mxu0
        %675 = vmatprep.mubr.f32.mxu0 0.0
        %676 = vmatmul.mubr.f32.gmra.mrb[0].mxu0 %v555
        %v677 = vpop.f32.mrb[0].mxu0
        %v678 = vadd.f32 %v594, %v677
        %v679 = vpop.f32.mrb[0].mxu0
        %680 = vmatprep.mubr.f32.mxu0 0.0
        %681 = vmatmul.mubr.f32.gmra.mrb[0].mxu0 %v556
        %v682 = vpop.f32.mrb[0].mxu0
        %v683 = vadd.f32 %v594, %v682
        %v684 = vpop.f32.mrb[0].mxu0
        %685 = vmatprep.mubr.f32.mxu0 0.0
        %686 = vmatmul.mubr.f32.gmra.mrb[0].mxu0 %v557
        %v687 = vpop.f32.mrb[0].mxu0
        %v688 = vadd.f32 %v594, %v687
        %v689 = vpop.f32.mrb[0].mxu0
        %690 = vmatprep.mubr.f32.mxu0 0.0
        %691 = vmatmul.mubr.f32.gmra.mrb[0].mxu0 %v558
        %v692 = vpop.f32.mrb[0].mxu0
        %v693 = vadd.f32 %v594, %v692
        %v694 = vpop.f32.mrb[0].mxu0
        %695 = vmatprep.mubr.f32.mxu0 0.0
        %696 = vmatmul.mubr.f32.gmra.mrb[0].mxu0 %v559
        %v697 = vpop.f32.mrb[0].mxu0
        %v698 = vadd.f32 %v594, %v697
        %v699 = vpop.f32.mrb[0].mxu0
        %700 = vmatprep.mubr.f32.mxu0 0.0
        %701 = vmatmul.mubr.f32.gmra.mrb[0].mxu0 %v560
        %v702 = vpop.f32.mrb[0].mxu0
        %v703 = vadd.f32 %v594, %v702
        %v704 = vpop.f32.mrb[0].mxu0
        %705 = vmatprep.mubr.f32.mxu0 0.0
        %706 = vmatmul.mubr.f32.gmra.mrb[0].mxu0 %v561
        %v707 = vpop.f32.mrb[0].mxu0
        %v708 = vadd.f32 %v594, %v707
        %v709 = vpop.f32.mrb[0].mxu0
        %710 = vmatprep.mubr.f32.mxu0 0.0
        %711 = vmatmul.mubr.f32.gmra.mrb[0].mxu0 %v562
        %v712 = vpop.f32.mrb[0].mxu0
        %v713 = vadd.f32 %v594, %v712
        %v714 = vpop.f32.mrb[0].mxu0
        %715 = vmatprep.mubr.f32.mxu0 0.0
        %716 = vmatmul.mubr.f32.gmra.mrb[0].mxu0 %v563
        %v717 = vpop.f32.mrb[0].mxu0
        %v718 = vadd.f32 %v594, %v717
        %v719 = vpop.f32.mrb[0].mxu0
        %720 = vmatprep.mubr.f32.mxu0 0.0
        %721 = vmatmul.mubr.f32.gmra.mrb[0].mxu0 %v564
        %v722 = vpop.f32.mrb[0].mxu0
        %v723 = vadd.f32 %v594, %v722
        %v724 = vpop.f32.mrb[0].mxu0
        %725 = vmatprep.mubr.f32.mxu0 0.0
        %726 = vmatmul.mubr.f32.gmra.mrb[0].mxu0 %v565
        %v727 = vpop.f32.mrb[0].mxu0
        %v728 = vadd.f32 %v594, %v727
        %v729 = vpop.f32.mrb[0].mxu0
        %730 = vmatprep.mubr.f32.mxu0 0.0
        %731 = vmatmul.mubr.f32.gmra.mrb[0].mxu0 %v566
        %v732 = vpop.f32.mrb[0].mxu0
        %v733 = vadd.f32 %v594, %v732
        %v734 = vpop.f32.mrb[0].mxu0
        %735 = vmatprep.mubr.f32.mxu0 0.0
        %736 = vmatmul.mubr.f32.gmra.mrb[0].mxu0 %v567
        %v737 = vpop.f32.mrb[0].mxu0
        %v738 = vadd.f32 %v594, %v737
        %v739 = vpop.f32.mrb[0].mxu0
        %740 = vmatprep.mubr.f32.mxu0 0.0
        %741 = vmatmul.mubr.f32.gmra.mrb[0].mxu0 %v568
        %v742 = vpop.f32.mrb[0].mxu0
        %v743 = vadd.f32 %v594, %v742
        %v744 = vpop.f32.mrb[0].mxu0
        %745 = vmatprep.mubr.f32.mxu0 0.0
        %746 = vmatmul.mubr.f32.gmra.mrb[0].mxu0 %v569
        %v747 = vpop.f32.mrb[0].mxu0
        %v748 = vadd.f32 %v594, %v747
        %v749 = vpop.f32.mrb[0].mxu0
        %750 = vmatprep.mubr.f32.mxu0 0.0
        %751 = vmatmul.mubr.f32.gmra.mrb[0].mxu0 %v570
        %v752 = vpop.f32.mrb[0].mxu0
        %v753 = vadd.f32 %v594, %v752
        %v754 = vpop.f32.mrb[0].mxu0
        %755 = vmatprep.mubr.f32.mxu0 0.0
        %756 = vmatmul.mubr.f32.gmra.mrb[0].mxu0 %v571
        %v757 = vpop.f32.mrb[0].mxu0
        %v758 = vadd.f32 %v594, %v757
        %v759 = vpop.f32.mrb[0].mxu0
        %760 = vmatprep.mubr.f32.mxu0 0.0
        %761 = vmatmul.mubr.f32.gmra.mrb[0].mxu0 %v572
        %v762 = vpop.f32.mrb[0].mxu0
        %v763 = vadd.f32 %v594, %v762
        %v764 = vpop.f32.mrb[0].mxu0
        %765 = vdwg.mxu0
        %766 = vst [vmem:[%s218] sm:$0xff] %v663
        %767 = vst [vmem:[%s218 + $0x8] sm:$0xff] %v668
        %768 = vst [vmem:[%s218 + $0x10] sm:$0xff] %v673
        %769 = vst [vmem:[%s218 + $0x18] sm:$0xff] %v678
        %770 = vst [vmem:[%s218 + $0x20] sm:$0xff] %v683
        %771 = vst [vmem:[%s218 + $0x28] sm:$0xff] %v688
        %772 = vst [vmem:[%s218 + $0x30] sm:$0xff] %v693
        %773 = vst [vmem:[%s218 + $0x38] sm:$0xff] %v698
        %774 = vst [vmem:[%s218 + $0x40] sm:$0xff] %v703
        %775 = vst [vmem:[%s218 + $0x48] sm:$0xff] %v708
        %776 = vst [vmem:[%s218 + $0x50] sm:$0xff] %v713
        %777 = vst [vmem:[%s218 + $0x58] sm:$0xff] %v718
        %778 = vst [vmem:[%s218 + $0x60] sm:$0xff] %v723
        %779 = vst [vmem:[%s218 + $0x68] sm:$0xff] %v728
        %780 = vst [vmem:[%s218 + $0x70] sm:$0xff] %v733
        %781 = vst [vmem:[%s218 + $0x78] sm:$0xff] %v738
        %782 = vst [vmem:[%s218 + $0x80] sm:$0xff] %v743
        %783 = vst [vmem:[%s218 + $0x88] sm:$0xff] %v748
        %784 = vst [vmem:[%s218 + $0x90] sm:$0xff] %v753
        %785 = vst [vmem:[%s218 + $0x98] sm:$0xff] %v758
        %786 = vst [vmem:[%s218 + $0xa0] sm:$0xff] %v763
        %s787 = sand.u32 %s137, 1
        %s788 = scalar_lea.sflag [#allocation3], %s787
        %s789 = sand.u32 %s137, 1
        %s790 = smul.addr %s789, 168
        %s791 = scalar_lea.vmem [#allocation2], %s790
        // Predicated region
        $region41: #{tpu_custom_call.1} parent=39 // pred_check
          %p792 = pneg %p147
        $region42: #{tpu_custom_call.1} parent=39 // pred_check_branch
          %794 = sbr.rel (%p792) target = $region44
        $region43: #{tpu_custom_call.1} parent=39 // pred_region
          %s795 = smul.u32 21, %s19
          %s797 = ssub.s32 2688, 2688
          %798 = vsyncadd %s788, %s797
          %s799 = smul.addr %s795, 128
          %s800 = scalar_lea.hbm %s5, %s799
          %s801 = sshll.u32 %s791, 4
          %s802 = int_to_ptr.vmem [resolvable:$true] %s801
          %807 = dma.vmem_to_hbm [thread:$0]  %s802, 2688, %s800, %s788, 128, 128, 8
        $region44: #{tpu_custom_call.1} parent=39 // pred_fallthru
          _
      $region40: #{tpu_custom_call.1} parent=5 // pred_fallthru
        _
      %p808 = scmp.le.s32.totalorder 2, %s14
      // Predicated region
      $region45: #{tpu_custom_call.1} parent=5 // pred_check
        %p809 = pneg %p808
      $region46: #{tpu_custom_call.1} parent=5 // pred_check_branch
        %811 = sbr.rel (%p809) target = $region48
      $region47: #{tpu_custom_call.1} parent=5 // pred_region
        %s812 = ssub.s32 %s14, 2
        // Predicated region
        $region49: #{tpu_custom_call.1} parent=47 // pred_check
          %p813 = pneg %p153
        $region50: #{tpu_custom_call.1} parent=47 // pred_check_branch
          %815 = sbr.rel (%p813) target = $region52
        $region51: #{tpu_custom_call.1} parent=47 // pred_region
          %s816 = sand.u32 %s138, 1
          %s817 = scalar_lea.sflag [#allocation3], %s816
          %s818 = sand.u32 %s138, 1
          %s819 = smul.addr %s818, 168
          %s820 = scalar_lea.vmem [#allocation2], %s819
          %821 = dma.done %s817, 2688
        $region52: #{tpu_custom_call.1} parent=47 // pred_fallthru
          _
      $region48: #{tpu_custom_call.1} parent=5 // pred_fallthru
        _
    $region6: #{tpu_custom_call.1} parent=1 // loop_footer
      %s18 = sadd.s32 1, %s14
    $region7: #{tpu_custom_call.1} parent=1 // loop_footer_branch
      %13 = sbr.rel target = $region3
    $region8: #{tpu_custom_call.1} parent=1 // loop_exit
      _
    %822 = vsyncpa [#allocation3], 1
    %s823 = scalar_lea.sflag [#allocation3], 1
    %824 = vsyncpa %s823, 1

// kernel: tpu_custom_call.1
$region0: #{tpu_custom_call.1}
  #allocation0 [shape = 'u32[]', space=smem, size = 0x4, offset = 0x4, fixed_abs, tag = 'smem constant byte address 0x4 - core index']
  #allocation1 [shape = 'u32[144,128]{1,0:T(1,128)}', space=vmem, size = 0x12000, scoped, tag = 'internal scratch']
  %s0 = inlined_call_operand.vmem [shape: f32[332,32], index: 0, kind: input, shape index: {}]
  %s1 = inlined_call_operand.vmem [shape: f32[128,32], index: 1, kind: input, shape index: {}]
  %s2 = inlined_call_operand.vmem [shape: f32[1,128], index: 2, kind: input, shape index: {}]
  %s3 = inlined_call_operand.vmem [shape: f32[128,128], index: 3, kind: input, shape index: {}]
  %s4 = inlined_call_operand.vmem [shape: f32[1,128], index: 4, kind: input, shape index: {}]
  %s5 = inlined_call_operand.hbm [shape: f32[332,128], index: 5, kind: output, shape index: {}]
  %s6 = sld [smem:[#allocation0]]
  $region53: #{tpu_custom_call.1} parent=0
    _
  %s8 = ssub.s32 1, %s6
  %s9 = scalar_select 0, %s8, %s6
  $region1: #{tpu_custom_call.1} parent=0
    #allocation2 [shape = 'u8[172032]{0}', space=vmem, size = 0x2a000, scoped, tag = 'output window, operand 0']
    #allocation3 [shape = 's32[2]{0}', space=sflag, size = 0x8, scoped, tag = 'scoped memory for tpu_custom_call.1']
    %10 = vsyncpa [#allocation3], 0
    %s11 = scalar_lea.sflag [#allocation3], 1
    %12 = vsyncpa %s11, 0
    loop: start=0, step=1, limit=4
    $region2: #{tpu_custom_call.1} parent=1 // loop_pre_header
      _
    $region3: #{tpu_custom_call.1} parent=1 // loop_header
      %s14 = sphi 0, %s18
      %p15 = scmp.ge.s32.totalorder %s14, 4
      %s24 = sphi 0, %s26
      %s27 = sphi 0, %s24
      %s28 = sphi 0, %s27
      %s44 = sphi 0, %s28
      %s48 = sphi 0, %s48
      %s50 = sphi 0, %s48
      %s51 = sphi 0, %s50
      %s65 = sphi 0, %s51
      %s69 = sphi 0, %s69
      %s71 = sphi 0, %s69
      %s72 = sphi 0, %s71
      %s86 = sphi 0, %s72
      %s90 = sphi 0, %s90
      %s92 = sphi 0, %s90
      %s93 = sphi 0, %s92
      %s107 = sphi 0, %s93
      %s111 = sphi 0, %s111
      %s113 = sphi 0, %s111
      %s114 = sphi 0, %s113
      %s128 = sphi 0, %s114
      %s134 = sphi 0, %s136
      %s137 = sphi 0, %s134
      %s138 = sphi 0, %s137
      %s154 = sphi 0, %s138
    $region4: #{tpu_custom_call.1} parent=1 // loop_header_branch
      %17 = sbr.rel (%p15) target = $region8
    $region5: #{tpu_custom_call.1} parent=1 // loop_body
      %s19 = ssub.s32 %s14, 1
      %s20 = ssub.s32 %s14, 2
      %s21 = sadd.s32 %s14, 1
      %s22 = ssub.s32 %s14, %s21
      %p23 = scmp.eq.s32.totalorder %s22, 0
      %s25 = sadd.s32 %s24, 1
      %s26 = scalar_select %p23, %s24, %s25
      %p29 = pneg %p23
      %p30 = scmp.eq.s32.totalorder %s14, 1
      %p31 = por %p29, %p30
      %p32 = scmp.ne.s32.totalorder %s24, %s27
      %p33 = scmp.eq.s32.totalorder %s14, 0
      %p34 = por %p32, %p33
      %p35 = scmp.ne.s32.totalorder %s24, %s27
      %p36 = scmp.eq.s32.totalorder %s19, 1
      %p37 = por %p35, %p36
      %p38 = scmp.ne.s32.totalorder %s27, %s28
      %p39 = scmp.eq.s32.totalorder %s19, 0
      %p40 = por %p38, %p39
      %p41 = scmp.ne.s32.totalorder %s27, %s28
      %p42 = scmp.eq.s32.totalorder %s20, 1
      %p43 = por %p41, %p42
      %p45 = scmp.ne.s32.totalorder %s28, %s44
      %p46 = scmp.eq.s32.totalorder %s20, 0
      %p47 = por %p45, %p46
      %s49 = sadd.s32 %s48, 1
      %p52 = scmp.eq.s32.totalorder %s14, 1
      %p53 = scmp.ne.s32.totalorder %s48, %s50
      %p54 = scmp.eq.s32.totalorder %s14, 0
      %p55 = por %p53, %p54
      %p56 = scmp.ne.s32.totalorder %s48, %s50
      %p57 = scmp.eq.s32.totalorder %s19, 1
      %p58 = por %p56, %p57
      %p59 = scmp.ne.s32.totalorder %s50, %s51
      %p60 = scmp.eq.s32.totalorder %s19, 0
      %p61 = por %p59, %p60
      %p62 = scmp.ne.s32.totalorder %s50, %s51
      %p63 = scmp.eq.s32.totalorder %s20, 1
      %p64 = por %p62, %p63
      %p66 = scmp.ne.s32.totalorder %s51, %s65
      %p67 = scmp.eq.s32.totalorder %s20, 0
      %p68 = por %p66, %p67
      %s70 = sadd.s32 %s69, 1
      %p73 = scmp.eq.s32.totalorder %s14, 1
      %p74 = scmp.ne.s32.totalorder %s69, %s71
      %p75 = scmp.eq.s32.totalorder %s14, 0
      %p76 = por %p74, %p75
      %p77 = scmp.ne.s32.totalorder %s69, %s71
      %p78 = scmp.eq.s32.totalorder %s19, 1
      %p79 = por %p77, %p78
      %p80 = scmp.ne.s32.totalorder %s71, %s72
      %p81 = scmp.eq.s32.totalorder %s19, 0
      %p82 = por %p80, %p81
      %p83 = scmp.ne.s32.totalorder %s71, %s72
      %p84 = scmp.eq.s32.totalorder %s20, 1
      %p85 = por %p83, %p84
      %p87 = scmp.ne.s32.totalorder %s72, %s86
      %p88 = scmp.eq.s32.totalorder %s20, 0
      %p89 = por %p87, %p88
      %s91 = sadd.s32 %s90, 1
      %p94 = scmp.eq.s32.totalorder %s14, 1
      %p95 = scmp.ne.s32.totalorder %s90, %s92
      %p96 = scmp.eq.s32.totalorder %s14, 0
      %p97 = por %p95, %p96
      %p98 = scmp.ne.s32.totalorder %s90, %s92
      %p99 = scmp.eq.s32.totalorder %s19, 1
      %p100 = por %p98, %p99
      %p101 = scmp.ne.s32.totalorder %s92, %s93
      %p102 = scmp.eq.s32.totalorder %s19, 0
      %p103 = por %p101, %p102
      %p104 = scmp.ne.s32.totalorder %s92, %s93
      %p105 = scmp.eq.s32.totalorder %s20, 1
      %p106 = por %p104, %p105
      %p108 = scmp.ne.s32.totalorder %s93, %s107
      %p109 = scmp.eq.s32.totalorder %s20, 0
      %p110 = por %p108, %p109
      %s112 = sadd.s32 %s111, 1
      %p115 = scmp.eq.s32.totalorder %s14, 1
      %p116 = scmp.ne.s32.totalorder %s111, %s113
      %p117 = scmp.eq.s32.totalorder %s14, 0
      %p118 = por %p116, %p117
      %p119 = scmp.ne.s32.totalorder %s111, %s113
      %p120 = scmp.eq.s32.totalorder %s19, 1
      %p121 = por %p119, %p120
      %p122 = scmp.ne.s32.totalorder %s113, %s114
      %p123 = scmp.eq.s32.totalorder %s19, 0
      %p124 = por %p122, %p123
      %p125 = scmp.ne.s32.totalorder %s113, %s114
      %p126 = scmp.eq.s32.totalorder %s20, 1
      %p127 = por %p125, %p126
      %p129 = scmp.ne.s32.totalorder %s114, %s128
      %p130 = scmp.eq.s32.totalorder %s20, 0
      %p131 = por %p129, %p130
      %s132 = ssub.s32 %s14, %s21
      %p133 = scmp.eq.s32.totalorder %s132, 0
      %s135 = sadd.s32 %s134, 1
      %s136 = scalar_select %p133, %s134, %s135
      %p139 = pneg %p133
      %p140 = scmp.eq.s32.totalorder %s14, 1
      %p141 = por %p139, %p140
      %p142 = scmp.ne.s32.totalorder %s134, %s137
      %p143 = scmp.eq.s32.totalorder %s14, 0
      %p144 = por %p142, %p143
      %p145 = scmp.ne.s32.totalorder %s134, %s137
      %p146 = scmp.eq.s32.totalorder %s19, 1
      %p147 = por %p145, %p146
      %p148 = scmp.ne.s32.totalorder %s137, %s138
      %p149 = scmp.eq.s32.totalorder %s19, 0
      %p150 = por %p148, %p149
      %p151 = scmp.ne.s32.totalorder %s137, %s138
      %p152 = scmp.eq.s32.totalorder %s20, 1
      %p153 = por %p151, %p152
      %p155 = scmp.ne.s32.totalorder %s138, %s154
      %p156 = scmp.eq.s32.totalorder %s20, 0
      %p157 = por %p155, %p156
      %p158 = scmp.le.s32.totalorder 1, %s14
      %p159 = scmp.lt.s32.totalorder %s14, 3
      %p160 = pnand %p158, %p159
      %p161 = pneg %p160
      // Predicated region
      $region9: #{tpu_custom_call.1} parent=5 // pred_check
        _
      $region10: #{tpu_custom_call.1} parent=5 // pred_check_branch
        %163 = sbr.rel (%p160) target = $region12
      $region11: #{tpu_custom_call.1} parent=5 // pred_region
        %s164 = ssub.s32 %s14, 1
        // Predicated region
        $region13: #{tpu_custom_call.1} parent=11 // pred_check
          %p165 = pneg %p61
        $region14: #{tpu_custom_call.1} parent=11 // pred_check_branch
          %167 = sbr.rel (%p165) target = $region16
        $region15: #{tpu_custom_call.1} parent=11 // pred_region
          _
        $region16: #{tpu_custom_call.1} parent=11 // pred_fallthru
          _
        // Predicated region
        $region17: #{tpu_custom_call.1} parent=11 // pred_check
          %p168 = pneg %p82
        $region18: #{tpu_custom_call.1} parent=11 // pred_check_branch
          %170 = sbr.rel (%p168) target = $region20
        $region19: #{tpu_custom_call.1} parent=11 // pred_region
          _
        $region20: #{tpu_custom_call.1} parent=11 // pred_fallthru
          _
        // Predicated region
        $region21: #{tpu_custom_call.1} parent=11 // pred_check
          %p171 = pneg %p103
        $region22: #{tpu_custom_call.1} parent=11 // pred_check_branch
          %173 = sbr.rel (%p171) target = $region24
        $region23: #{tpu_custom_call.1} parent=11 // pred_region
          _
        $region24: #{tpu_custom_call.1} parent=11 // pred_fallthru
          _
        // Predicated region
        $region25: #{tpu_custom_call.1} parent=11 // pred_check
          %p174 = pneg %p124
        $region26: #{tpu_custom_call.1} parent=11 // pred_check_branch
          %176 = sbr.rel (%p174) target = $region28
        $region27: #{tpu_custom_call.1} parent=11 // pred_region
          _
        $region28: #{tpu_custom_call.1} parent=11 // pred_fallthru
          _
      $region12: #{tpu_custom_call.1} parent=5 // pred_fallthru
        _
      %p177 = scmp.lt.s32.totalorder %s14, 2
      // Predicated region
      $region29: #{tpu_custom_call.1} parent=5 // pred_check
        %p178 = pneg %p177
      $region30: #{tpu_custom_call.1} parent=5 // pred_check_branch
        %180 = sbr.rel (%p178) target = $region32
      $region31: #{tpu_custom_call.1} parent=5 // pred_region
        // Predicated region
        $region33: #{tpu_custom_call.1} parent=31 // pred_check
          %p181 = pneg %p34
        $region34: #{tpu_custom_call.1} parent=31 // pred_check_branch
          %183 = sbr.rel (%p181) target = $region36
        $region35: #{tpu_custom_call.1} parent=31 // pred_region
          %s184 = smul.u32 21, %s14
          %p185 = scmp.lt.s32.totalorder %s184, 41
          %s186 = scalar_select %p185, %s184, 41
          %s187 = smul.addr %s186, 8
          %s188 = scalar_lea.vmem %s0, %s187
          %s189 = smul.u32 21, %s14
        $region36: #{tpu_custom_call.1} parent=31 // pred_fallthru
          _
      $region32: #{tpu_custom_call.1} parent=5 // pred_fallthru
        _
      %p190 = scmp.le.s32.totalorder 1, %s14
      %p191 = scmp.lt.s32.totalorder %s14, 3
      %p192 = pnand %p190, %p191
      %p193 = pneg %p192
      // Predicated region
      $region37: #{tpu_custom_call.1} parent=5 // pred_check
        _
      $region38: #{tpu_custom_call.1} parent=5 // pred_check_branch
        %195 = sbr.rel (%p192) target = $region40
      $region39: #{tpu_custom_call.1} parent=5 // pred_region
        %s196 = ssub.s32 %s14, 1
        %s197 = smul.u32 21, %s19
        %p198 = scmp.lt.s32.totalorder %s197, 41
        %s199 = scalar_select %p198, %s197, 41
        %s200 = smul.addr %s199, 8
        %s201 = scalar_lea.vmem %s0, %s200
        %p202 = pneg %p40
        %p203 = pneg %p37
        %p204 = pneg %p61
        %p205 = pneg %p58
        %p206 = pneg %p82
        %p207 = pneg %p79
        %p208 = pneg %p103
        %p209 = pneg %p100
        %p210 = pneg %p124
        %p211 = pneg %p121
        %p212 = pneg %p150
        %p213 = pneg %p147
        %s214 = sand.u32 %s137, 1
        %s215 = scalar_lea.sflag [#allocation3], %s214
        %s216 = sand.u32 %s137, 1
        %s217 = smul.addr %s216, 168
        %s218 = scalar_lea.vmem [#allocation2], %s217
        %s219 = smul.u32 21, %s19
        %p220 = scmp.lt.s32.totalorder %s219, 41
        %s221 = scalar_select %p220, %s219, 41
        %s222 = smul.addr %s221, 8
        %s223 = scalar_lea.vmem %s0, %s222
        %s224 = smul.u32 21, %s19
        %s225 = smul.u32 21, %s19
        %v226 = vld [vmem:[%s223] sm:$0xff]
        %v227 = vld [vmem:[%s223 + $0x8] sm:$0xff]
        %v228 = vld [vmem:[%s223 + $0x10] sm:$0xff]
        %v229 = vld [vmem:[%s223 + $0x18] sm:$0xff]
        %v230 = vld [vmem:[%s223 + $0x20] sm:$0xff]
        %v231 = vld [vmem:[%s223 + $0x28] sm:$0xff]
        %v232 = vld [vmem:[%s223 + $0x30] sm:$0xff]
        %v233 = vld [vmem:[%s223 + $0x38] sm:$0xff]
        %v234 = vld [vmem:[%s223 + $0x40] sm:$0xff]
        %v235 = vld [vmem:[%s223 + $0x48] sm:$0xff]
        %v236 = vld [vmem:[%s223 + $0x50] sm:$0xff]
        %v237 = vld [vmem:[%s223 + $0x58] sm:$0xff]
        %v238 = vld [vmem:[%s223 + $0x60] sm:$0xff]
        %v239 = vld [vmem:[%s223 + $0x68] sm:$0xff]
        %v240 = vld [vmem:[%s223 + $0x70] sm:$0xff]
        %v241 = vld [vmem:[%s223 + $0x78] sm:$0xff]
        %v242 = vld [vmem:[%s223 + $0x80] sm:$0xff]
        %v243 = vld [vmem:[%s223 + $0x88] sm:$0xff]
        %v244 = vld [vmem:[%s223 + $0x90] sm:$0xff]
        %v245 = vld [vmem:[%s223 + $0x98] sm:$0xff]
        %v246 = vld [vmem:[%s223 + $0xa0] sm:$0xff]
        %v247 = vld [vmem:[%s1] sm:$0xff]
        %v248 = vld [vmem:[%s1 + $0x8] sm:$0xff]
        %v249 = vld [vmem:[%s1 + $0x10] sm:$0xff]
        %v250 = vld [vmem:[%s1 + $0x18] sm:$0xff]
        %v251 = vld [vmem:[%s1 + $0x20] sm:$0xff]
        %v252 = vld [vmem:[%s1 + $0x28] sm:$0xff]
        %v253 = vld [vmem:[%s1 + $0x30] sm:$0xff]
        %v254 = vld [vmem:[%s1 + $0x38] sm:$0xff]
        %v255 = vld [vmem:[%s1 + $0x40] sm:$0xff]
        %v256 = vld [vmem:[%s1 + $0x48] sm:$0xff]
        %v257 = vld [vmem:[%s1 + $0x50] sm:$0xff]
        %v258 = vld [vmem:[%s1 + $0x58] sm:$0xff]
        %v259 = vld [vmem:[%s1 + $0x60] sm:$0xff]
        %v260 = vld [vmem:[%s1 + $0x68] sm:$0xff]
        %v261 = vld [vmem:[%s1 + $0x70] sm:$0xff]
        %v262 = vld [vmem:[%s1 + $0x78] sm:$0xff]
        %v263 = vld [vmem:[%s2] sm:$0x1]
        %v265 = vlaneseq
        %v266 = vshrl.u32 %v265, 7
        %v267 = vsub.s32 0, %v266
        %v268 = vrot.slane %v263, %v267
        %vm270 = vcmask 261120
        %v272 = vsel %vm270, %v226, 0
        %v275 = vsel %vm270, %v227, 0
        %v278 = vsel %vm270, %v228, 0
        %v281 = vsel %vm270, %v229, 0
        %v284 = vsel %vm270, %v230, 0
        %v287 = vsel %vm270, %v231, 0
        %v290 = vsel %vm270, %v232, 0
        %v293 = vsel %vm270, %v233, 0
        %v296 = vsel %vm270, %v234, 0
        %v299 = vsel %vm270, %v235, 0
        %v302 = vsel %vm270, %v236, 0
        %v305 = vsel %vm270, %v237, 0
        %v308 = vsel %vm270, %v238, 0
        %v311 = vsel %vm270, %v239, 0
        %v314 = vsel %vm270, %v240, 0
        %v317 = vsel %vm270, %v241, 0
        %v320 = vsel %vm270, %v242, 0
        %v323 = vsel %vm270, %v243, 0
        %v326 = vsel %vm270, %v244, 0
        %v329 = vsel %vm270, %v245, 0
        %v332 = vsel %vm270, %v246, 0
        %v335 = vsel %vm270, %v247, 0
        %v338 = vsel %vm270, %v248, 0
        %v341 = vsel %vm270, %v249, 0
        %v344 = vsel %vm270, %v250, 0
        %v347 = vsel %vm270, %v251, 0
        %v350 = vsel %vm270, %v252, 0
        %v353 = vsel %vm270, %v253, 0
        %v356 = vsel %vm270, %v254, 0
        %v359 = vsel %vm270, %v255, 0
        %v362 = vsel %vm270, %v256, 0
        %v365 = vsel %vm270, %v257, 0
        %v368 = vsel %vm270, %v258, 0
        %v371 = vsel %vm270, %v259, 0
        %v374 = vsel %vm270, %v260, 0
        %v377 = vsel %vm270, %v261, 0
        %v380 = vsel %vm270, %v262, 0
        %382 = vmatprep.subr.mxu0 0.0
        %383 = vmatpush1.xpose.msra.mxu0 %v335
        %384 = vmatprep.subr.mxu0 0.0
        %385 = vmatpush1.xpose.msra.mxu0 %v338
        %386 = vmatprep.subr.mxu0 0.0
        %387 = vmatpush1.xpose.msra.mxu0 %v341
        %388 = vmatprep.subr.mxu0 0.0
        %389 = vmatpush1.xpose.msra.mxu0 %v344
        %390 = vmatprep.subr.mxu0 0.0
        %391 = vmatpush1.xpose.msra.mxu0 %v347
        %392 = vmatprep.subr.mxu0 0.0
        %393 = vmatpush1.xpose.msra.mxu0 %v350
        %394 = vmatprep.subr.mxu0 0.0
        %395 = vmatpush1.xpose.msra.mxu0 %v353
        %396 = vmatprep.subr.mxu0 0.0
        %397 = vmatpush1.xpose.msra.mxu0 %v356
        %398 = vmatprep.subr.mxu0 0.0
        %399 = vmatpush1.xpose.msra.mxu0 %v359
        %400 = vmatprep.subr.mxu0 0.0
        %401 = vmatpush1.xpose.msra.mxu0 %v362
        %402 = vmatprep.subr.mxu0 0.0
        %403 = vmatpush1.xpose.msra.mxu0 %v365
        %404 = vmatprep.subr.mxu0 0.0
        %405 = vmatpush1.xpose.msra.mxu0 %v368
        %406 = vmatprep.subr.mxu0 0.0
        %407 = vmatpush1.xpose.msra.mxu0 %v371
        %408 = vmatprep.subr.mxu0 0.0
        %409 = vmatpush1.xpose.msra.mxu0 %v374
        %410 = vmatprep.subr.mxu0 0.0
        %411 = vmatpush1.xpose.msra.mxu0 %v377
        %412 = vmatprep.subr.mxu0 0.0
        %413 = vmatpush1.xpose.msra.mxu0 %v380
        %414 = vmatprep.subr.mxu0 0.0
        %415 = vmatpush1.xpose.msra.mxu0 0.0
        %416 = vmatprep.subr.mxu0 0.0
        %417 = vmatpush1.xpose.msra.mxu0 0.0
        %418 = vmatprep.subr.mxu0 0.0
        %419 = vmatpush1.xpose.msra.mxu0 0.0
        %420 = vmatprep.subr.mxu0 0.0
        %421 = vmatpush1.xpose.msra.mxu0 0.0
        %422 = vmatprep.subr.mxu0 0.0
        %423 = vmatpush1.xpose.msra.mxu0 0.0
        %424 = vmatprep.subr.mxu0 0.0
        %425 = vmatpush1.xpose.msra.mxu0 0.0
        %426 = vmatprep.subr.mxu0 0.0
        %427 = vmatpush1.xpose.msra.mxu0 0.0
        %428 = vmatprep.subr.mxu0 0.0
        %429 = vmatpush1.xpose.msra.mxu0 0.0
        %430 = vmatprep.subr.mxu0 0.0
        %431 = vmatpush1.xpose.msra.mxu0 0.0
        %432 = vmatprep.subr.mxu0 0.0
        %433 = vmatpush1.xpose.msra.mxu0 0.0
        %434 = vmatprep.subr.mxu0 0.0
        %435 = vmatpush1.xpose.msra.mxu0 0.0
        %436 = vmatprep.subr.mxu0 0.0
        %437 = vmatpush1.xpose.msra.mxu0 0.0
        %438 = vmatprep.subr.mxu0 0.0
        %439 = vmatpush1.xpose.msra.mxu0 0.0
        %440 = vmatprep.subr.mxu0 0.0
        %441 = vmatpush1.xpose.msra.mxu0 0.0
        %442 = vmatprep.subr.mxu0 0.0
        %443 = vmatpush1.xpose.msra.mxu0 0.0
        %444 = vmatprep.subr.mxu0 0.0
        %445 = vmatpush1.xpose.msra.mxu0 0.0
        %446 = vmatprep.mubr.f32.mxu0 0.0
        %447 = vmatmul.mubr.f32.gmra.mrb[0].mxu0 %v272
        %v448 = vpop.f32.mrb[0].mxu0
        %v449 = vadd.f32 %v268, %v448
        %v450 = vpop.f32.mrb[0].mxu0
        %451 = vmatprep.mubr.f32.mxu0 0.0
        %452 = vmatmul.mubr.f32.gmra.mrb[0].mxu0 %v275
        %v453 = vpop.f32.mrb[0].mxu0
        %v454 = vadd.f32 %v268, %v453
        %v455 = vpop.f32.mrb[0].mxu0
        %456 = vmatprep.mubr.f32.mxu0 0.0
        %457 = vmatmul.mubr.f32.gmra.mrb[0].mxu0 %v278
        %v458 = vpop.f32.mrb[0].mxu0
        %v459 = vadd.f32 %v268, %v458
        %v460 = vpop.f32.mrb[0].mxu0
        %461 = vmatprep.mubr.f32.mxu0 0.0
        %462 = vmatmul.mubr.f32.gmra.mrb[0].mxu0 %v281
        %v463 = vpop.f32.mrb[0].mxu0
        %v464 = vadd.f32 %v268, %v463
        %v465 = vpop.f32.mrb[0].mxu0
        %466 = vmatprep.mubr.f32.mxu0 0.0
        %467 = vmatmul.mubr.f32.gmra.mrb[0].mxu0 %v284
        %v468 = vpop.f32.mrb[0].mxu0
        %v469 = vadd.f32 %v268, %v468
        %v470 = vpop.f32.mrb[0].mxu0
        %471 = vmatprep.mubr.f32.mxu0 0.0
        %472 = vmatmul.mubr.f32.gmra.mrb[0].mxu0 %v287
        %v473 = vpop.f32.mrb[0].mxu0
        %v474 = vadd.f32 %v268, %v473
        %v475 = vpop.f32.mrb[0].mxu0
        %476 = vmatprep.mubr.f32.mxu0 0.0
        %477 = vmatmul.mubr.f32.gmra.mrb[0].mxu0 %v290
        %v478 = vpop.f32.mrb[0].mxu0
        %v479 = vadd.f32 %v268, %v478
        %v480 = vpop.f32.mrb[0].mxu0
        %481 = vmatprep.mubr.f32.mxu0 0.0
        %482 = vmatmul.mubr.f32.gmra.mrb[0].mxu0 %v293
        %v483 = vpop.f32.mrb[0].mxu0
        %v484 = vadd.f32 %v268, %v483
        %v485 = vpop.f32.mrb[0].mxu0
        %486 = vmatprep.mubr.f32.mxu0 0.0
        %487 = vmatmul.mubr.f32.gmra.mrb[0].mxu0 %v296
        %v488 = vpop.f32.mrb[0].mxu0
        %v489 = vadd.f32 %v268, %v488
        %v490 = vpop.f32.mrb[0].mxu0
        %491 = vmatprep.mubr.f32.mxu0 0.0
        %492 = vmatmul.mubr.f32.gmra.mrb[0].mxu0 %v299
        %v493 = vpop.f32.mrb[0].mxu0
        %v494 = vadd.f32 %v268, %v493
        %v495 = vpop.f32.mrb[0].mxu0
        %496 = vmatprep.mubr.f32.mxu0 0.0
        %497 = vmatmul.mubr.f32.gmra.mrb[0].mxu0 %v302
        %v498 = vpop.f32.mrb[0].mxu0
        %v499 = vadd.f32 %v268, %v498
        %v500 = vpop.f32.mrb[0].mxu0
        %501 = vmatprep.mubr.f32.mxu0 0.0
        %502 = vmatmul.mubr.f32.gmra.mrb[0].mxu0 %v305
        %v503 = vpop.f32.mrb[0].mxu0
        %v504 = vadd.f32 %v268, %v503
        %v505 = vpop.f32.mrb[0].mxu0
        %506 = vmatprep.mubr.f32.mxu0 0.0
        %507 = vmatmul.mubr.f32.gmra.mrb[0].mxu0 %v308
        %v508 = vpop.f32.mrb[0].mxu0
        %v509 = vadd.f32 %v268, %v508
        %v510 = vpop.f32.mrb[0].mxu0
        %511 = vmatprep.mubr.f32.mxu0 0.0
        %512 = vmatmul.mubr.f32.gmra.mrb[0].mxu0 %v311
        %v513 = vpop.f32.mrb[0].mxu0
        %v514 = vadd.f32 %v268, %v513
        %v515 = vpop.f32.mrb[0].mxu0
        %516 = vmatprep.mubr.f32.mxu0 0.0
        %517 = vmatmul.mubr.f32.gmra.mrb[0].mxu0 %v314
        %v518 = vpop.f32.mrb[0].mxu0
        %v519 = vadd.f32 %v268, %v518
        %v520 = vpop.f32.mrb[0].mxu0
        %521 = vmatprep.mubr.f32.mxu0 0.0
        %522 = vmatmul.mubr.f32.gmra.mrb[0].mxu0 %v317
        %v523 = vpop.f32.mrb[0].mxu0
        %v524 = vadd.f32 %v268, %v523
        %v525 = vpop.f32.mrb[0].mxu0
        %526 = vmatprep.mubr.f32.mxu0 0.0
        %527 = vmatmul.mubr.f32.gmra.mrb[0].mxu0 %v320
        %v528 = vpop.f32.mrb[0].mxu0
        %v529 = vadd.f32 %v268, %v528
        %v530 = vpop.f32.mrb[0].mxu0
        %531 = vmatprep.mubr.f32.mxu0 0.0
        %532 = vmatmul.mubr.f32.gmra.mrb[0].mxu0 %v323
        %v533 = vpop.f32.mrb[0].mxu0
        %v534 = vadd.f32 %v268, %v533
        %v535 = vpop.f32.mrb[0].mxu0
        %536 = vmatprep.mubr.f32.mxu0 0.0
        %537 = vmatmul.mubr.f32.gmra.mrb[0].mxu0 %v326
        %v538 = vpop.f32.mrb[0].mxu0
        %v539 = vadd.f32 %v268, %v538
        %v540 = vpop.f32.mrb[0].mxu0
        %541 = vmatprep.mubr.f32.mxu0 0.0
        %542 = vmatmul.mubr.f32.gmra.mrb[0].mxu0 %v329
        %v543 = vpop.f32.mrb[0].mxu0
        %v544 = vadd.f32 %v268, %v543
        %v545 = vpop.f32.mrb[0].mxu0
        %546 = vmatprep.mubr.f32.mxu0 0.0
        %547 = vmatmul.mubr.f32.gmra.mrb[0].mxu0 %v332
        %v548 = vpop.f32.mrb[0].mxu0
        %v549 = vadd.f32 %v268, %v548
        %v550 = vpop.f32.mrb[0].mxu0
        %551 = vdwg.mxu0
        %v552 = vmax.f32 %v449, 0.0
        %v553 = vmax.f32 %v454, 0.0
        %v554 = vmax.f32 %v459, 0.0
        %v555 = vmax.f32 %v464, 0.0
        %v556 = vmax.f32 %v469, 0.0
        %v557 = vmax.f32 %v474, 0.0
        %v558 = vmax.f32 %v479, 0.0
        %v559 = vmax.f32 %v484, 0.0
        %v560 = vmax.f32 %v489, 0.0
        %v561 = vmax.f32 %v494, 0.0
        %v562 = vmax.f32 %v499, 0.0
        %v563 = vmax.f32 %v504, 0.0
        %v564 = vmax.f32 %v509, 0.0
        %v565 = vmax.f32 %v514, 0.0
        %v566 = vmax.f32 %v519, 0.0
        %v567 = vmax.f32 %v524, 0.0
        %v568 = vmax.f32 %v529, 0.0
        %v569 = vmax.f32 %v534, 0.0
        %v570 = vmax.f32 %v539, 0.0
        %v571 = vmax.f32 %v544, 0.0
        %v572 = vmax.f32 %v549, 0.0
        %v573 = vld [vmem:[%s3] sm:$0xff]
        %v574 = vld [vmem:[%s3 + $0x8] sm:$0xff]
        %v575 = vld [vmem:[%s3 + $0x10] sm:$0xff]
        %v576 = vld [vmem:[%s3 + $0x18] sm:$0xff]
        %v577 = vld [vmem:[%s3 + $0x20] sm:$0xff]
        %v578 = vld [vmem:[%s3 + $0x28] sm:$0xff]
        %v579 = vld [vmem:[%s3 + $0x30] sm:$0xff]
        %v580 = vld [vmem:[%s3 + $0x38] sm:$0xff]
        %v581 = vld [vmem:[%s3 + $0x40] sm:$0xff]
        %v582 = vld [vmem:[%s3 + $0x48] sm:$0xff]
        %v583 = vld [vmem:[%s3 + $0x50] sm:$0xff]
        %v584 = vld [vmem:[%s3 + $0x58] sm:$0xff]
        %v585 = vld [vmem:[%s3 + $0x60] sm:$0xff]
        %v586 = vld [vmem:[%s3 + $0x68] sm:$0xff]
        %v587 = vld [vmem:[%s3 + $0x70] sm:$0xff]
        %v588 = vld [vmem:[%s3 + $0x78] sm:$0xff]
        %v589 = vld [vmem:[%s4] sm:$0x1]
        %v591 = vlaneseq
        %v592 = vshrl.u32 %v591, 7
        %v593 = vsub.s32 0, %v592
        %v594 = vrot.slane %v589, %v593
        %596 = vmatprep.subr.mxu0 0.0
        %597 = vmatpush1.xpose.msra.mxu0 %v573
        %598 = vmatprep.subr.mxu0 0.0
        %599 = vmatpush1.xpose.msra.mxu0 %v574
        %600 = vmatprep.subr.mxu0 0.0
        %601 = vmatpush1.xpose.msra.mxu0 %v575
        %602 = vmatprep.subr.mxu0 0.0
        %603 = vmatpush1.xpose.msra.mxu0 %v576
        %604 = vmatprep.subr.mxu0 0.0
        %605 = vmatpush1.xpose.msra.mxu0 %v577
        %606 = vmatprep.subr.mxu0 0.0
        %607 = vmatpush1.xpose.msra.mxu0 %v578
        %608 = vmatprep.subr.mxu0 0.0
        %609 = vmatpush1.xpose.msra.mxu0 %v579
        %610 = vmatprep.subr.mxu0 0.0
        %611 = vmatpush1.xpose.msra.mxu0 %v580
        %612 = vmatprep.subr.mxu0 0.0
        %613 = vmatpush1.xpose.msra.mxu0 %v581
        %614 = vmatprep.subr.mxu0 0.0
        %615 = vmatpush1.xpose.msra.mxu0 %v582
        %616 = vmatprep.subr.mxu0 0.0
        %617 = vmatpush1.xpose.msra.mxu0 %v583
        %618 = vmatprep.subr.mxu0 0.0
        %619 = vmatpush1.xpose.msra.mxu0 %v584
        %620 = vmatprep.subr.mxu0 0.0
        %621 = vmatpush1.xpose.msra.mxu0 %v585
        %622 = vmatprep.subr.mxu0 0.0
        %623 = vmatpush1.xpose.msra.mxu0 %v586
        %624 = vmatprep.subr.mxu0 0.0
        %625 = vmatpush1.xpose.msra.mxu0 %v587
        %626 = vmatprep.subr.mxu0 0.0
        %627 = vmatpush1.xpose.msra.mxu0 %v588
        %628 = vmatprep.subr.mxu0 0.0
        %629 = vmatpush1.xpose.msra.mxu0 0.0
        %630 = vmatprep.subr.mxu0 0.0
        %631 = vmatpush1.xpose.msra.mxu0 0.0
        %632 = vmatprep.subr.mxu0 0.0
        %633 = vmatpush1.xpose.msra.mxu0 0.0
        %634 = vmatprep.subr.mxu0 0.0
        %635 = vmatpush1.xpose.msra.mxu0 0.0
        %636 = vmatprep.subr.mxu0 0.0
        %637 = vmatpush1.xpose.msra.mxu0 0.0
        %638 = vmatprep.subr.mxu0 0.0
        %639 = vmatpush1.xpose.msra.mxu0 0.0
        %640 = vmatprep.subr.mxu0 0.0
        %641 = vmatpush1.xpose.msra.mxu0 0.0
        %642 = vmatprep.subr.mxu0 0.0
        %643 = vmatpush1.xpose.msra.mxu0 0.0
        %644 = vmatprep.subr.mxu0 0.0
        %645 = vmatpush1.xpose.msra.mxu0 0.0
        %646 = vmatprep.subr.mxu0 0.0
        %647 = vmatpush1.xpose.msra.mxu0 0.0
        %648 = vmatprep.subr.mxu0 0.0
        %649 = vmatpush1.xpose.msra.mxu0 0.0
        %650 = vmatprep.subr.mxu0 0.0
        %651 = vmatpush1.xpose.msra.mxu0 0.0
        %652 = vmatprep.subr.mxu0 0.0
        %653 = vmatpush1.xpose.msra.mxu0 0.0
        %654 = vmatprep.subr.mxu0 0.0
        %655 = vmatpush1.xpose.msra.mxu0 0.0
        %656 = vmatprep.subr.mxu0 0.0
        %657 = vmatpush1.xpose.msra.mxu0 0.0
        %658 = vmatprep.subr.mxu0 0.0
        %659 = vmatpush1.xpose.msra.mxu0 0.0
        %660 = vmatprep.mubr.f32.mxu0 0.0
        %661 = vmatmul.mubr.f32.gmra.mrb[0].mxu0 %v552
        %v662 = vpop.f32.mrb[0].mxu0
        %v663 = vadd.f32 %v594, %v662
        %v664 = vpop.f32.mrb[0].mxu0
        %665 = vmatprep.mubr.f32.mxu0 0.0
        %666 = vmatmul.mubr.f32.gmra.mrb[0].mxu0 %v553
        %v667 = vpop.f32.mrb[0].mxu0
        %v668 = vadd.f32 %v594, %v667
        %v669 = vpop.f32.mrb[0].mxu0
        %670 = vmatprep.mubr.f32.mxu0 0.0
        %671 = vmatmul.mubr.f32.gmra.mrb[0].mxu0 %v554
        %v672 = vpop.f32.mrb[0].mxu0
        %v673 = vadd.f32 %v594, %v672
        %v674 = vpop.f32.mrb[0].mxu0
        %675 = vmatprep.mubr.f32.mxu0 0.0
        %676 = vmatmul.mubr.f32.gmra.mrb[0].mxu0 %v555
        %v677 = vpop.f32.mrb[0].mxu0
        %v678 = vadd.f32 %v594, %v677
        %v679 = vpop.f32.mrb[0].mxu0
        %680 = vmatprep.mubr.f32.mxu0 0.0
        %681 = vmatmul.mubr.f32.gmra.mrb[0].mxu0 %v556
        %v682 = vpop.f32.mrb[0].mxu0
        %v683 = vadd.f32 %v594, %v682
        %v684 = vpop.f32.mrb[0].mxu0
        %685 = vmatprep.mubr.f32.mxu0 0.0
        %686 = vmatmul.mubr.f32.gmra.mrb[0].mxu0 %v557
        %v687 = vpop.f32.mrb[0].mxu0
        %v688 = vadd.f32 %v594, %v687
        %v689 = vpop.f32.mrb[0].mxu0
        %690 = vmatprep.mubr.f32.mxu0 0.0
        %691 = vmatmul.mubr.f32.gmra.mrb[0].mxu0 %v558
        %v692 = vpop.f32.mrb[0].mxu0
        %v693 = vadd.f32 %v594, %v692
        %v694 = vpop.f32.mrb[0].mxu0
        %695 = vmatprep.mubr.f32.mxu0 0.0
        %696 = vmatmul.mubr.f32.gmra.mrb[0].mxu0 %v559
        %v697 = vpop.f32.mrb[0].mxu0
        %v698 = vadd.f32 %v594, %v697
        %v699 = vpop.f32.mrb[0].mxu0
        %700 = vmatprep.mubr.f32.mxu0 0.0
        %701 = vmatmul.mubr.f32.gmra.mrb[0].mxu0 %v560
        %v702 = vpop.f32.mrb[0].mxu0
        %v703 = vadd.f32 %v594, %v702
        %v704 = vpop.f32.mrb[0].mxu0
        %705 = vmatprep.mubr.f32.mxu0 0.0
        %706 = vmatmul.mubr.f32.gmra.mrb[0].mxu0 %v561
        %v707 = vpop.f32.mrb[0].mxu0
        %v708 = vadd.f32 %v594, %v707
        %v709 = vpop.f32.mrb[0].mxu0
        %710 = vmatprep.mubr.f32.mxu0 0.0
        %711 = vmatmul.mubr.f32.gmra.mrb[0].mxu0 %v562
        %v712 = vpop.f32.mrb[0].mxu0
        %v713 = vadd.f32 %v594, %v712
        %v714 = vpop.f32.mrb[0].mxu0
        %715 = vmatprep.mubr.f32.mxu0 0.0
        %716 = vmatmul.mubr.f32.gmra.mrb[0].mxu0 %v563
        %v717 = vpop.f32.mrb[0].mxu0
        %v718 = vadd.f32 %v594, %v717
        %v719 = vpop.f32.mrb[0].mxu0
        %720 = vmatprep.mubr.f32.mxu0 0.0
        %721 = vmatmul.mubr.f32.gmra.mrb[0].mxu0 %v564
        %v722 = vpop.f32.mrb[0].mxu0
        %v723 = vadd.f32 %v594, %v722
        %v724 = vpop.f32.mrb[0].mxu0
        %725 = vmatprep.mubr.f32.mxu0 0.0
        %726 = vmatmul.mubr.f32.gmra.mrb[0].mxu0 %v565
        %v727 = vpop.f32.mrb[0].mxu0
        %v728 = vadd.f32 %v594, %v727
        %v729 = vpop.f32.mrb[0].mxu0
        %730 = vmatprep.mubr.f32.mxu0 0.0
        %731 = vmatmul.mubr.f32.gmra.mrb[0].mxu0 %v566
        %v732 = vpop.f32.mrb[0].mxu0
        %v733 = vadd.f32 %v594, %v732
        %v734 = vpop.f32.mrb[0].mxu0
        %735 = vmatprep.mubr.f32.mxu0 0.0
        %736 = vmatmul.mubr.f32.gmra.mrb[0].mxu0 %v567
        %v737 = vpop.f32.mrb[0].mxu0
        %v738 = vadd.f32 %v594, %v737
        %v739 = vpop.f32.mrb[0].mxu0
        %740 = vmatprep.mubr.f32.mxu0 0.0
        %741 = vmatmul.mubr.f32.gmra.mrb[0].mxu0 %v568
        %v742 = vpop.f32.mrb[0].mxu0
        %v743 = vadd.f32 %v594, %v742
        %v744 = vpop.f32.mrb[0].mxu0
        %745 = vmatprep.mubr.f32.mxu0 0.0
        %746 = vmatmul.mubr.f32.gmra.mrb[0].mxu0 %v569
        %v747 = vpop.f32.mrb[0].mxu0
        %v748 = vadd.f32 %v594, %v747
        %v749 = vpop.f32.mrb[0].mxu0
        %750 = vmatprep.mubr.f32.mxu0 0.0
        %751 = vmatmul.mubr.f32.gmra.mrb[0].mxu0 %v570
        %v752 = vpop.f32.mrb[0].mxu0
        %v753 = vadd.f32 %v594, %v752
        %v754 = vpop.f32.mrb[0].mxu0
        %755 = vmatprep.mubr.f32.mxu0 0.0
        %756 = vmatmul.mubr.f32.gmra.mrb[0].mxu0 %v571
        %v757 = vpop.f32.mrb[0].mxu0
        %v758 = vadd.f32 %v594, %v757
        %v759 = vpop.f32.mrb[0].mxu0
        %760 = vmatprep.mubr.f32.mxu0 0.0
        %761 = vmatmul.mubr.f32.gmra.mrb[0].mxu0 %v572
        %v762 = vpop.f32.mrb[0].mxu0
        %v763 = vadd.f32 %v594, %v762
        %v764 = vpop.f32.mrb[0].mxu0
        %765 = vdwg.mxu0
        %766 = vst [vmem:[%s218] sm:$0xff] %v663
        %767 = vst [vmem:[%s218 + $0x8] sm:$0xff] %v668
        %768 = vst [vmem:[%s218 + $0x10] sm:$0xff] %v673
        %769 = vst [vmem:[%s218 + $0x18] sm:$0xff] %v678
        %770 = vst [vmem:[%s218 + $0x20] sm:$0xff] %v683
        %771 = vst [vmem:[%s218 + $0x28] sm:$0xff] %v688
        %772 = vst [vmem:[%s218 + $0x30] sm:$0xff] %v693
        %773 = vst [vmem:[%s218 + $0x38] sm:$0xff] %v698
        %774 = vst [vmem:[%s218 + $0x40] sm:$0xff] %v703
        %775 = vst [vmem:[%s218 + $0x48] sm:$0xff] %v708
        %776 = vst [vmem:[%s218 + $0x50] sm:$0xff] %v713
        %777 = vst [vmem:[%s218 + $0x58] sm:$0xff] %v718
        %778 = vst [vmem:[%s218 + $0x60] sm:$0xff] %v723
        %779 = vst [vmem:[%s218 + $0x68] sm:$0xff] %v728
        %780 = vst [vmem:[%s218 + $0x70] sm:$0xff] %v733
        %781 = vst [vmem:[%s218 + $0x78] sm:$0xff] %v738
        %782 = vst [vmem:[%s218 + $0x80] sm:$0xff] %v743
        %783 = vst [vmem:[%s218 + $0x88] sm:$0xff] %v748
        %784 = vst [vmem:[%s218 + $0x90] sm:$0xff] %v753
        %785 = vst [vmem:[%s218 + $0x98] sm:$0xff] %v758
        %786 = vst [vmem:[%s218 + $0xa0] sm:$0xff] %v763
        %s787 = sand.u32 %s137, 1
        %s788 = scalar_lea.sflag [#allocation3], %s787
        %s789 = sand.u32 %s137, 1
        %s790 = smul.addr %s789, 168
        %s791 = scalar_lea.vmem [#allocation2], %s790
        // Predicated region
        $region41: #{tpu_custom_call.1} parent=39 // pred_check
          %p792 = pneg %p147
        $region42: #{tpu_custom_call.1} parent=39 // pred_check_branch
          %794 = sbr.rel (%p792) target = $region44
        $region43: #{tpu_custom_call.1} parent=39 // pred_region
          %s795 = smul.u32 21, %s19
          %s797 = ssub.s32 2688, 2688
          %798 = vsyncadd %s788, %s797
          %s799 = smul.addr %s795, 128
          %s800 = scalar_lea.hbm %s5, %s799
          %s801 = sshll.u32 %s791, 4
          %s802 = int_to_ptr.vmem [resolvable:$true] %s801
          %807 = dma.vmem_to_hbm [thread:$0]  %s802, 2688, %s800, %s788, 128, 128, 8
        $region44: #{tpu_custom_call.1} parent=39 // pred_fallthru
          _
      $region40: #{tpu_custom_call.1} parent=5 // pred_fallthru
        _
      %p808 = scmp.le.s32.totalorder 2, %s14
      // Predicated region
      $region45: #{tpu_custom_call.1} parent=5 // pred_check
        %p809 = pneg %p808
      $region46: #{tpu_custom_call.1} parent=5 // pred_check_branch
        %811 = sbr.rel (%p809) target = $region48
      $region47: #{tpu_custom_call.1} parent=5 // pred_region
        %s812 = ssub.s32 %s14, 2
        // Predicated region
        $region49: #{tpu_custom_call.1} parent=47 // pred_check
          %p813 = pneg %p153
        $region50: #{tpu_custom_call.1} parent=47 // pred_check_branch
          %815 = sbr.rel (%p813) target = $region52
        $region51: #{tpu_custom_call.1} parent=47 // pred_region
          %s816 = sand.u32 %s138, 1
          %s817 = scalar_lea.sflag [#allocation3], %s816
          %s818 = sand.u32 %s138, 1
          %s819 = smul.addr %s818, 168
          %s820 = scalar_lea.vmem [#allocation2], %s819
          %821 = dma.done %s817, 2688
        $region52: #{tpu_custom_call.1} parent=47 // pred_fallthru
          _
      $region48: #{tpu_custom_call.1} parent=5 // pred_fallthru
        _
    $region6: #{tpu_custom_call.1} parent=1 // loop_footer
      %s18 = sadd.s32 1, %s14
    $region7: #{tpu_custom_call.1} parent=1 // loop_footer_branch
      %13 = sbr.rel target = $region3
    $region8: #{tpu_custom_call.1} parent=1 // loop_exit
      _
    %822 = vsyncpa [#allocation3], 1
    %s823 = scalar_lea.sflag [#allocation3], 1
    %824 = vsyncpa %s823, 1

</llo_original>
